<compile_context>
chip_gen: v5e
topology: v5e:2x2
jax: 0.10.0
libtpu: 0.0.40
codegen_flags: <defaults>
</compile_context>

<pallas_src>
import functools

import jax
import jax.numpy as jnp
from jax import lax
from jax.experimental import pallas as pl
from jax.experimental.pallas import tpu as pltpu

ITERS = 10
ALPHA = 0.9
NODE_PAD = 256   # pad N to a multiple of this for aligned MXU / vreg tiles


def label_prop_kernel(adj_ref, y_ref, out_ref, *, unroll):
    """Runs all ITERS propagation steps on VMEM-resident operands.

    adj_ref: (Np, Np) f32, adj[dst, src] = alpha * dinv[dst] * dinv[src].
    y_ref:   (Np, C)  f32 one-hot labels (zero rows for padded nodes).
    """
    adj = adj_ref[...]                            # read once, resident for all iters
    y = y_ref[...]
    res = (1.0 - ALPHA) * y                       # computed once

    def body(_, out):
        # adj streams through the MXU as LHS; the skinny (Np, C) carry is the
        # stationary RHS weight operand. f32 accumulation.
        prop = jnp.dot(adj, out, preferred_element_type=jnp.float32)
        return jnp.clip(prop + res, 0.0, 1.0)     # post_step: clamp_(0, 1)

    out_ref[...] = lax.fori_loop(0, ITERS, body, y, unroll=unroll)


def _vmem_limit_bytes(adj_bytes, y_bytes):
    """Generation-aware scoped-VMEM budget with headroom for temporaries."""
    try:
        cap = pltpu.get_tpu_info().vmem_capacity_bytes   # 128 MiB v5e/v6e, 64 MiB v7x
    except Exception:                                    # no TPU / interpret mode
        cap = 128 * 2**20
    headroom = 8 * 2**20                  # Mosaic internal scratch + live temporaries
    required = adj_bytes + 4 * y_bytes + 2 * 2**20       # adj + y/res/out/prop + slack
    return int(max(2 * 2**20, min(cap - headroom, required)))


def label_propagation(adj, y):
    """adj: (Np, Np) f32 = alpha * D^-1/2 A D^-1/2 (row = dst), y: (Np, C) f32."""
    n_pad, c = y.shape
    adj_bytes = n_pad * n_pad * adj.dtype.itemsize
    y_bytes = n_pad * c * 4

    return pl.pallas_call(
        functools.partial(label_prop_kernel, unroll=n_pad <= 512),
        out_shape=jax.ShapeDtypeStruct((n_pad, c), jnp.float32),
        in_specs=[
            pl.BlockSpec(memory_space=pltpu.MemorySpace.VMEM),   # adj, read once
            pl.BlockSpec(memory_space=pltpu.MemorySpace.VMEM),   # y
        ],
        out_specs=pl.BlockSpec(memory_space=pltpu.MemorySpace.VMEM),
        compiler_params=pltpu.CompilerParams(
            vmem_limit_bytes=_vmem_limit_bytes(adj_bytes, y_bytes)),
        cost_estimate=pl.CostEstimate(
            flops=2 * n_pad * n_pad * c * ITERS,
            transcendentals=0,
            bytes_accessed=adj_bytes + 2 * y_bytes),
    )(adj, y)


def build_prop_matrix(edge_index, num_nodes_padded, alpha):
    """alpha * D^-1/2 A D^-1/2 laid out as adj[dst, src]; alpha folded in once.

    Plain-JAX glue: the data-dependent edge scatter has no rectangular
    BlockSpec form. Padded rows/cols are exactly zero (no edges, degree 0).
    """
    row, col = edge_index[0], edge_index[1]              # src, dst
    w = jnp.ones(row.shape[0], dtype=jnp.float32)
    deg = jnp.zeros((num_nodes_padded,), jnp.float32).at[col].add(w)
    dinv = jnp.where(deg > 0, lax.rsqrt(jnp.maximum(deg, 1e-12)), 0.0)
    ew = alpha * dinv[row] * w * dinv[col]               # alpha folded once
    adj = jnp.zeros((num_nodes_padded, num_nodes_padded),
                    jnp.float32).at[col, row].add(ew)
    return adj


@functools.partial(jax.jit, static_argnames=("num_classes",))
def prop_model_forward(nodes, edge_index, num_classes):
    """nodes: int32 labels (N,) | edge_index: int32 (2, E) as [src; dst].

    Degree normalization is over dst (matches PyG gcn_norm on a directed edge
    list); pre-symmetrize edge_index for undirected graphs. Returns (N, C).
    """
    num_nodes = nodes.shape[0]
    n_pad = ((num_nodes + NODE_PAD - 1) // NODE_PAD) * NODE_PAD
    y = jax.nn.one_hot(nodes, num_classes, dtype=jnp.float32)         # (N, C)
    y = jnp.pad(y, ((0, n_pad - num_nodes), (0, 0)))                  # zero labels
    adj = build_prop_matrix(edge_index, n_pad, ALPHA)                 # (Np, Np)
    out = label_propagation(adj, y)                                   # (Np, C)
    return out[:num_nodes]                                            # (N, C)


# ----------------------------- reference -------------------------------------

def _reference_f32(nodes, edge_index, num_classes):
    """Exact (unpadded) f32 emulation of LabelPropagation."""
    num_nodes = nodes.shape[0]
    y = jax.nn.one_hot(nodes, num_classes, dtype=jnp.float32)
    row, col = edge_index[0], edge_index[1]
    w = jnp.ones(row.shape[0], dtype=jnp.float32)
    deg = jnp.zeros((num_nodes,), jnp.float32).at[col].add(w)
    dinv = jnp.where(deg > 0, lax.rsqrt(jnp.maximum(deg, 1e-12)), 0.0)
    ew = dinv[row] * w * dinv[col]
    adj = jnp.zeros((num_nodes, num_nodes), jnp.float32).at[col, row].add(ew)
    res = (1.0 - ALPHA) * y
    out = y
    for _ in range(ITERS):
        out = jnp.clip(ALPHA * (adj @ out) + res, 0.0, 1.0)
    return out


if __name__ == "__main__":
    key = jax.random.PRNGKey(0)
    k_lab, k_src, k_dst = jax.random.split(key, 3)

    N = 32        # nodes
    C = 8         # label classes
    E = 96        # directed edges

    nodes = jax.random.randint(k_lab, (N,), 0, C, dtype=jnp.int32)
    src = jax.random.randint(k_src, (E,), 0, N, dtype=jnp.int32)
    dst = jax.random.randint(k_dst, (E,), 0, N, dtype=jnp.int32)
    edge_index = jnp.stack([src, dst], axis=0)           # (2, E)

    out = prop_model_forward(nodes, edge_index, C)
    out = jax.block_until_ready(out)
    assert out.shape == (N, C)

    # Operands are f32 end to end; the only possible deviation from the exact
    # reference is the backend's matmul pass precision, hence the loose bound.
    ref = _reference_f32(nodes, edge_index, C)
    assert jnp.allclose(out, ref, atol=5e-2), "mismatch vs f32 reference"

    print("KERNEL_OK")
</pallas_src>

<mosaic_0001>
module attributes {stable_mosaic.version = 11 : i64} {
  func.func @label_prop_kernel(%arg0: memref<256x256xf32, #tpu.memory_space<vmem>>, %arg1: memref<256x8xf32, #tpu.memory_space<vmem>>, %arg2: memref<256x8xf32, #tpu.memory_space<vmem>>) attributes {dimension_semantics = [], scalar_prefetch = 0 : i64, scratch_operands = 0 : i64, tpu.core_type = #tpu.core_type<tc>} {
    %c0 = arith.constant 0 : index
    %c0_0 = arith.constant 0 : index
    %0 = vector.load %arg0[%c0, %c0_0] : memref<256x256xf32, #tpu.memory_space<vmem>>, vector<256x256xf32>
    %c0_1 = arith.constant 0 : index
    %c0_2 = arith.constant 0 : index
    %1 = vector.load %arg1[%c0_1, %c0_2] : memref<256x8xf32, #tpu.memory_space<vmem>>, vector<256x8xf32>
    %cst = arith.constant 1.000000e-01 : f32
    %2 = vector.broadcast %cst : f32 to vector<256x8xf32>
    %3 = arith.mulf %2, %1 : vector<256x8xf32>
    %c0_i32 = arith.constant 0 : i32
    %cst_3 = arith.constant dense<0.000000e+00> : vector<256x8xf32>
    %4 = tpu.matmul %0, %1, %cst_3 {dimension_numbers = #tpu.dot_dimension_numbers<[1], [0], [0], [1], [0, 0, 1, 1], [], []>} : vector<256x256xf32>, vector<256x8xf32>, vector<256x8xf32> -> vector<256x8xf32>
    %5 = arith.addf %4, %3 : vector<256x8xf32>
    %cst_4 = arith.constant 0.000000e+00 : f32
    %cst_5 = arith.constant 1.000000e+00 : f32
    %6 = vector.broadcast %cst_4 : f32 to vector<256x8xf32>
    %7 = arith.maximumf %6, %5 : vector<256x8xf32>
    %8 = vector.broadcast %cst_5 : f32 to vector<256x8xf32>
    %9 = arith.minimumf %8, %7 : vector<256x8xf32>
    %c1_i32 = arith.constant 1 : i32
    %cst_6 = arith.constant dense<0.000000e+00> : vector<256x8xf32>
    %10 = tpu.matmul %0, %9, %cst_6 {dimension_numbers = #tpu.dot_dimension_numbers<[1], [0], [0], [1], [0, 0, 1, 1], [], []>} : vector<256x256xf32>, vector<256x8xf32>, vector<256x8xf32> -> vector<256x8xf32>
    %11 = arith.addf %10, %3 : vector<256x8xf32>
    %cst_7 = arith.constant 0.000000e+00 : f32
    %cst_8 = arith.constant 1.000000e+00 : f32
    %12 = vector.broadcast %cst_7 : f32 to vector<256x8xf32>
    %13 = arith.maximumf %12, %11 : vector<256x8xf32>
    %14 = vector.broadcast %cst_8 : f32 to vector<256x8xf32>
    %15 = arith.minimumf %14, %13 : vector<256x8xf32>
    %c2_i32 = arith.constant 2 : i32
    %cst_9 = arith.constant dense<0.000000e+00> : vector<256x8xf32>
    %16 = tpu.matmul %0, %15, %cst_9 {dimension_numbers = #tpu.dot_dimension_numbers<[1], [0], [0], [1], [0, 0, 1, 1], [], []>} : vector<256x256xf32>, vector<256x8xf32>, vector<256x8xf32> -> vector<256x8xf32>
    %17 = arith.addf %16, %3 : vector<256x8xf32>
    %cst_10 = arith.constant 0.000000e+00 : f32
    %cst_11 = arith.constant 1.000000e+00 : f32
    %18 = vector.broadcast %cst_10 : f32 to vector<256x8xf32>
    %19 = arith.maximumf %18, %17 : vector<256x8xf32>
    %20 = vector.broadcast %cst_11 : f32 to vector<256x8xf32>
    %21 = arith.minimumf %20, %19 : vector<256x8xf32>
    %c3_i32 = arith.constant 3 : i32
    %cst_12 = arith.constant dense<0.000000e+00> : vector<256x8xf32>
    %22 = tpu.matmul %0, %21, %cst_12 {dimension_numbers = #tpu.dot_dimension_numbers<[1], [0], [0], [1], [0, 0, 1, 1], [], []>} : vector<256x256xf32>, vector<256x8xf32>, vector<256x8xf32> -> vector<256x8xf32>
    %23 = arith.addf %22, %3 : vector<256x8xf32>
    %cst_13 = arith.constant 0.000000e+00 : f32
    %cst_14 = arith.constant 1.000000e+00 : f32
    %24 = vector.broadcast %cst_13 : f32 to vector<256x8xf32>
    %25 = arith.maximumf %24, %23 : vector<256x8xf32>
    %26 = vector.broadcast %cst_14 : f32 to vector<256x8xf32>
    %27 = arith.minimumf %26, %25 : vector<256x8xf32>
    %c4_i32 = arith.constant 4 : i32
    %cst_15 = arith.constant dense<0.000000e+00> : vector<256x8xf32>
    %28 = tpu.matmul %0, %27, %cst_15 {dimension_numbers = #tpu.dot_dimension_numbers<[1], [0], [0], [1], [0, 0, 1, 1], [], []>} : vector<256x256xf32>, vector<256x8xf32>, vector<256x8xf32> -> vector<256x8xf32>
    %29 = arith.addf %28, %3 : vector<256x8xf32>
    %cst_16 = arith.constant 0.000000e+00 : f32
    %cst_17 = arith.constant 1.000000e+00 : f32
    %30 = vector.broadcast %cst_16 : f32 to vector<256x8xf32>
    %31 = arith.maximumf %30, %29 : vector<256x8xf32>
    %32 = vector.broadcast %cst_17 : f32 to vector<256x8xf32>
    %33 = arith.minimumf %32, %31 : vector<256x8xf32>
    %c5_i32 = arith.constant 5 : i32
    %cst_18 = arith.constant dense<0.000000e+00> : vector<256x8xf32>
    %34 = tpu.matmul %0, %33, %cst_18 {dimension_numbers = #tpu.dot_dimension_numbers<[1], [0], [0], [1], [0, 0, 1, 1], [], []>} : vector<256x256xf32>, vector<256x8xf32>, vector<256x8xf32> -> vector<256x8xf32>
    %35 = arith.addf %34, %3 : vector<256x8xf32>
    %cst_19 = arith.constant 0.000000e+00 : f32
    %cst_20 = arith.constant 1.000000e+00 : f32
    %36 = vector.broadcast %cst_19 : f32 to vector<256x8xf32>
    %37 = arith.maximumf %36, %35 : vector<256x8xf32>
    %38 = vector.broadcast %cst_20 : f32 to vector<256x8xf32>
    %39 = arith.minimumf %38, %37 : vector<256x8xf32>
    %c6_i32 = arith.constant 6 : i32
    %cst_21 = arith.constant dense<0.000000e+00> : vector<256x8xf32>
    %40 = tpu.matmul %0, %39, %cst_21 {dimension_numbers = #tpu.dot_dimension_numbers<[1], [0], [0], [1], [0, 0, 1, 1], [], []>} : vector<256x256xf32>, vector<256x8xf32>, vector<256x8xf32> -> vector<256x8xf32>
    %41 = arith.addf %40, %3 : vector<256x8xf32>
    %cst_22 = arith.constant 0.000000e+00 : f32
    %cst_23 = arith.constant 1.000000e+00 : f32
    %42 = vector.broadcast %cst_22 : f32 to vector<256x8xf32>
    %43 = arith.maximumf %42, %41 : vector<256x8xf32>
    %44 = vector.broadcast %cst_23 : f32 to vector<256x8xf32>
    %45 = arith.minimumf %44, %43 : vector<256x8xf32>
    %c7_i32 = arith.constant 7 : i32
    %cst_24 = arith.constant dense<0.000000e+00> : vector<256x8xf32>
    %46 = tpu.matmul %0, %45, %cst_24 {dimension_numbers = #tpu.dot_dimension_numbers<[1], [0], [0], [1], [0, 0, 1, 1], [], []>} : vector<256x256xf32>, vector<256x8xf32>, vector<256x8xf32> -> vector<256x8xf32>
    %47 = arith.addf %46, %3 : vector<256x8xf32>
    %cst_25 = arith.constant 0.000000e+00 : f32
    %cst_26 = arith.constant 1.000000e+00 : f32
    %48 = vector.broadcast %cst_25 : f32 to vector<256x8xf32>
    %49 = arith.maximumf %48, %47 : vector<256x8xf32>
    %50 = vector.broadcast %cst_26 : f32 to vector<256x8xf32>
    %51 = arith.minimumf %50, %49 : vector<256x8xf32>
    %c8_i32 = arith.constant 8 : i32
    %cst_27 = arith.constant dense<0.000000e+00> : vector<256x8xf32>
    %52 = tpu.matmul %0, %51, %cst_27 {dimension_numbers = #tpu.dot_dimension_numbers<[1], [0], [0], [1], [0, 0, 1, 1], [], []>} : vector<256x256xf32>, vector<256x8xf32>, vector<256x8xf32> -> vector<256x8xf32>
    %53 = arith.addf %52, %3 : vector<256x8xf32>
    %cst_28 = arith.constant 0.000000e+00 : f32
    %cst_29 = arith.constant 1.000000e+00 : f32
    %54 = vector.broadcast %cst_28 : f32 to vector<256x8xf32>
    %55 = arith.maximumf %54, %53 : vector<256x8xf32>
    %56 = vector.broadcast %cst_29 : f32 to vector<256x8xf32>
    %57 = arith.minimumf %56, %55 : vector<256x8xf32>
    %c9_i32 = arith.constant 9 : i32
    %cst_30 = arith.constant dense<0.000000e+00> : vector<256x8xf32>
    %58 = tpu.matmul %0, %57, %cst_30 {dimension_numbers = #tpu.dot_dimension_numbers<[1], [0], [0], [1], [0, 0, 1, 1], [], []>} : vector<256x256xf32>, vector<256x8xf32>, vector<256x8xf32> -> vector<256x8xf32>
    %59 = arith.addf %58, %3 : vector<256x8xf32>
    %cst_31 = arith.constant 0.000000e+00 : f32
    %cst_32 = arith.constant 1.000000e+00 : f32
    %60 = vector.broadcast %cst_31 : f32 to vector<256x8xf32>
    %61 = arith.maximumf %60, %59 : vector<256x8xf32>
    %62 = vector.broadcast %cst_32 : f32 to vector<256x8xf32>
    %63 = arith.minimumf %62, %61 : vector<256x8xf32>
    %c0_33 = arith.constant 0 : index
    %c0_34 = arith.constant 0 : index
    %64 = vector.load %arg2[%c0_33, %c0_34] : memref<256x8xf32, #tpu.memory_space<vmem>>, vector<256x8xf32>
    tpu.vector_store %arg2[%c0_33, %c0_34], %63 {strides = array<i32>} : memref<256x8xf32, #tpu.memory_space<vmem>>, vector<256x8xf32>,
    return
  }
}

</mosaic_0001>

<llo_original>
// kernel: prop_model_forward.1
$region0: #{prop_model_forward.1}
  #allocation0 [shape = 'u32[]', space=smem, size = 0x4, offset = 0x4, fixed_abs, tag = 'smem constant byte address 0x4 - core index']
  #allocation1 [shape = 'u32[72,128]{1,0:T(1,128)}', space=vmem, size = 0x9000, scoped, tag = 'internal scratch']
  %s0 = inlined_call_operand.vmem [shape: f32[256,256], index: 0, kind: input, shape index: {}]
  %s1 = inlined_call_operand.vmem [shape: f32[256,8], index: 1, kind: input, shape index: {}]
  %s2 = inlined_call_operand.vmem [shape: f32[256,8], index: 2, kind: output, shape index: {}]
  %s3 = sld [smem:[#allocation0]]
  $region18: #{prop_model_forward.1} parent=0
    _
  %s5 = ssub.s32 1, %s3
  %s6 = scalar_select 0, %s5, %s3
  // Predicated region
  $region2: #{prop_model_forward.1} parent=0 // pred_check
    _
  $region3: #{prop_model_forward.1} parent=0 // pred_check_branch
    %8 = sbr.rel (0) target = $region5
  $region4: #{prop_model_forward.1} parent=0 // pred_region
    _
  $region5: #{prop_model_forward.1} parent=0 // pred_fallthru
    _
  // Predicated region
  $region6: #{prop_model_forward.1} parent=0 // pred_check
    _
  $region7: #{prop_model_forward.1} parent=0 // pred_check_branch
    %10 = sbr.rel (0) target = $region9
  $region8: #{prop_model_forward.1} parent=0 // pred_region
    _
  $region9: #{prop_model_forward.1} parent=0 // pred_fallthru
    _
  %v11 = vld [vmem:[%s0] sm:$0xff]
  %v12 = vld [vmem:[%s0 + $0x8] sm:$0xff]
  %v13 = vld [vmem:[%s0 + $0x10] sm:$0xff]
  %v14 = vld [vmem:[%s0 + $0x18] sm:$0xff]
  %v15 = vld [vmem:[%s0 + $0x20] sm:$0xff]
  %v16 = vld [vmem:[%s0 + $0x28] sm:$0xff]
  %v17 = vld [vmem:[%s0 + $0x30] sm:$0xff]
  %v18 = vld [vmem:[%s0 + $0x38] sm:$0xff]
  %v19 = vld [vmem:[%s0 + $0x40] sm:$0xff]
  %v20 = vld [vmem:[%s0 + $0x48] sm:$0xff]
  %v21 = vld [vmem:[%s0 + $0x50] sm:$0xff]
  %v22 = vld [vmem:[%s0 + $0x58] sm:$0xff]
  %v23 = vld [vmem:[%s0 + $0x60] sm:$0xff]
  %v24 = vld [vmem:[%s0 + $0x68] sm:$0xff]
  %v25 = vld [vmem:[%s0 + $0x70] sm:$0xff]
  %v26 = vld [vmem:[%s0 + $0x78] sm:$0xff]
  %v27 = vld [vmem:[%s0 + $0x80] sm:$0xff]
  %v28 = vld [vmem:[%s0 + $0x88] sm:$0xff]
  %v29 = vld [vmem:[%s0 + $0x90] sm:$0xff]
  %v30 = vld [vmem:[%s0 + $0x98] sm:$0xff]
  %v31 = vld [vmem:[%s0 + $0xa0] sm:$0xff]
  %v32 = vld [vmem:[%s0 + $0xa8] sm:$0xff]
  %v33 = vld [vmem:[%s0 + $0xb0] sm:$0xff]
  %v34 = vld [vmem:[%s0 + $0xb8] sm:$0xff]
  %v35 = vld [vmem:[%s0 + $0xc0] sm:$0xff]
  %v36 = vld [vmem:[%s0 + $0xc8] sm:$0xff]
  %v37 = vld [vmem:[%s0 + $0xd0] sm:$0xff]
  %v38 = vld [vmem:[%s0 + $0xd8] sm:$0xff]
  %v39 = vld [vmem:[%s0 + $0xe0] sm:$0xff]
  %v40 = vld [vmem:[%s0 + $0xe8] sm:$0xff]
  %v41 = vld [vmem:[%s0 + $0xf0] sm:$0xff]
  %v42 = vld [vmem:[%s0 + $0xf8] sm:$0xff]
  %v43 = vld [vmem:[%s0 + $0x100] sm:$0xff]
  %v44 = vld [vmem:[%s0 + $0x108] sm:$0xff]
  %v45 = vld [vmem:[%s0 + $0x110] sm:$0xff]
  %v46 = vld [vmem:[%s0 + $0x118] sm:$0xff]
  %v47 = vld [vmem:[%s0 + $0x120] sm:$0xff]
  %v48 = vld [vmem:[%s0 + $0x128] sm:$0xff]
  %v49 = vld [vmem:[%s0 + $0x130] sm:$0xff]
  %v50 = vld [vmem:[%s0 + $0x138] sm:$0xff]
  %v51 = vld [vmem:[%s0 + $0x140] sm:$0xff]
  %v52 = vld [vmem:[%s0 + $0x148] sm:$0xff]
  %v53 = vld [vmem:[%s0 + $0x150] sm:$0xff]
  %v54 = vld [vmem:[%s0 + $0x158] sm:$0xff]
  %v55 = vld [vmem:[%s0 + $0x160] sm:$0xff]
  %v56 = vld [vmem:[%s0 + $0x168] sm:$0xff]
  %v57 = vld [vmem:[%s0 + $0x170] sm:$0xff]
  %v58 = vld [vmem:[%s0 + $0x178] sm:$0xff]
  %v59 = vld [vmem:[%s0 + $0x180] sm:$0xff]
  %v60 = vld [vmem:[%s0 + $0x188] sm:$0xff]
  %v61 = vld [vmem:[%s0 + $0x190] sm:$0xff]
  %v62 = vld [vmem:[%s0 + $0x198] sm:$0xff]
  %v63 = vld [vmem:[%s0 + $0x1a0] sm:$0xff]
  %v64 = vld [vmem:[%s0 + $0x1a8] sm:$0xff]
  %v65 = vld [vmem:[%s0 + $0x1b0] sm:$0xff]
  %v66 = vld [vmem:[%s0 + $0x1b8] sm:$0xff]
  %v67 = vld [vmem:[%s0 + $0x1c0] sm:$0xff]
  %v68 = vld [vmem:[%s0 + $0x1c8] sm:$0xff]
  %v69 = vld [vmem:[%s0 + $0x1d0] sm:$0xff]
  %v70 = vld [vmem:[%s0 + $0x1d8] sm:$0xff]
  %v71 = vld [vmem:[%s0 + $0x1e0] sm:$0xff]
  %v72 = vld [vmem:[%s0 + $0x1e8] sm:$0xff]
  %v73 = vld [vmem:[%s0 + $0x1f0] sm:$0xff]
  %v74 = vld [vmem:[%s0 + $0x1f8] sm:$0xff]
  %v75 = vld [vmem:[%s1] sm:$0xff]
  %v76 = vld [vmem:[%s1 + $0x8] sm:$0xff]
  %v77 = vld [vmem:[%s1 + $0x10] sm:$0xff]
  %v78 = vld [vmem:[%s1 + $0x18] sm:$0xff]
  %v79 = vld [vmem:[%s1 + $0x20] sm:$0xff]
  %v80 = vld [vmem:[%s1 + $0x28] sm:$0xff]
  %v81 = vld [vmem:[%s1 + $0x30] sm:$0xff]
  %v82 = vld [vmem:[%s1 + $0x38] sm:$0xff]
  %v83 = vld [vmem:[%s1 + $0x40] sm:$0xff]
  %v84 = vld [vmem:[%s1 + $0x48] sm:$0xff]
  %v85 = vld [vmem:[%s1 + $0x50] sm:$0xff]
  %v86 = vld [vmem:[%s1 + $0x58] sm:$0xff]
  %v87 = vld [vmem:[%s1 + $0x60] sm:$0xff]
  %v88 = vld [vmem:[%s1 + $0x68] sm:$0xff]
  %v89 = vld [vmem:[%s1 + $0x70] sm:$0xff]
  %v90 = vld [vmem:[%s1 + $0x78] sm:$0xff]
  %v91 = vld [vmem:[%s1 + $0x80] sm:$0xff]
  %v92 = vld [vmem:[%s1 + $0x88] sm:$0xff]
  %v93 = vld [vmem:[%s1 + $0x90] sm:$0xff]
  %v94 = vld [vmem:[%s1 + $0x98] sm:$0xff]
  %v95 = vld [vmem:[%s1 + $0xa0] sm:$0xff]
  %v96 = vld [vmem:[%s1 + $0xa8] sm:$0xff]
  %v97 = vld [vmem:[%s1 + $0xb0] sm:$0xff]
  %v98 = vld [vmem:[%s1 + $0xb8] sm:$0xff]
  %v99 = vld [vmem:[%s1 + $0xc0] sm:$0xff]
  %v100 = vld [vmem:[%s1 + $0xc8] sm:$0xff]
  %v101 = vld [vmem:[%s1 + $0xd0] sm:$0xff]
  %v102 = vld [vmem:[%s1 + $0xd8] sm:$0xff]
  %v103 = vld [vmem:[%s1 + $0xe0] sm:$0xff]
  %v104 = vld [vmem:[%s1 + $0xe8] sm:$0xff]
  %v105 = vld [vmem:[%s1 + $0xf0] sm:$0xff]
  %v106 = vld [vmem:[%s1 + $0xf8] sm:$0xff]
  %v107 = vmul.f32 %v75, 0.1
  %v108 = vmul.f32 %v76, 0.1
  %v109 = vmul.f32 %v77, 0.1
  %v110 = vmul.f32 %v78, 0.1
  %v111 = vmul.f32 %v79, 0.1
  %v112 = vmul.f32 %v80, 0.1
  %v113 = vmul.f32 %v81, 0.1
  %v114 = vmul.f32 %v82, 0.1
  %v115 = vmul.f32 %v83, 0.1
  %v116 = vmul.f32 %v84, 0.1
  %v117 = vmul.f32 %v85, 0.1
  %v118 = vmul.f32 %v86, 0.1
  %v119 = vmul.f32 %v87, 0.1
  %v120 = vmul.f32 %v88, 0.1
  %v121 = vmul.f32 %v89, 0.1
  %v122 = vmul.f32 %v90, 0.1
  %v123 = vmul.f32 %v91, 0.1
  %v124 = vmul.f32 %v92, 0.1
  %v125 = vmul.f32 %v93, 0.1
  %v126 = vmul.f32 %v94, 0.1
  %v127 = vmul.f32 %v95, 0.1
  %v128 = vmul.f32 %v96, 0.1
  %v129 = vmul.f32 %v97, 0.1
  %v130 = vmul.f32 %v98, 0.1
  %v131 = vmul.f32 %v99, 0.1
  %v132 = vmul.f32 %v100, 0.1
  %v133 = vmul.f32 %v101, 0.1
  %v134 = vmul.f32 %v102, 0.1
  %v135 = vmul.f32 %v103, 0.1
  %v136 = vmul.f32 %v104, 0.1
  %v137 = vmul.f32 %v105, 0.1
  %v138 = vmul.f32 %v106, 0.1
  %139 = vmatpush.msra.mxu0 %v90
  %140 = vmatpush.msra.mxu0 %v89
  %141 = vmatpush.msra.mxu0 %v88
  %142 = vmatpush.msra.mxu0 %v87
  %143 = vmatpush.msra.mxu0 %v86
  %144 = vmatpush.msra.mxu0 %v85
  %145 = vmatpush.msra.mxu0 %v84
  %146 = vmatpush.msra.mxu0 %v83
  %147 = vmatpush.msra.mxu0 %v82
  %148 = vmatpush.msra.mxu0 %v81
  %149 = vmatpush.msra.mxu0 %v80
  %150 = vmatpush.msra.mxu0 %v79
  %151 = vmatpush.msra.mxu0 %v78
  %152 = vmatpush.msra.mxu0 %v77
  %153 = vmatpush.msra.mxu0 %v76
  %154 = vmatpush.msra.mxu0 %v75
  %155 = vmatmul.f32.gmra.mxu0 %v11
  %v156 = vpop.f32.mrf.mxu0
  %v157 = vadd.f32 %v107, %v156
  %158 = vmatmul.f32.gmra.mxu0 %v13
  %v159 = vpop.f32.mrf.mxu0
  %v160 = vadd.f32 %v108, %v159
  %161 = vmatmul.f32.gmra.mxu0 %v15
  %v162 = vpop.f32.mrf.mxu0
  %v163 = vadd.f32 %v109, %v162
  %164 = vmatmul.f32.gmra.mxu0 %v17
  %v165 = vpop.f32.mrf.mxu0
  %v166 = vadd.f32 %v110, %v165
  %167 = vmatmul.f32.gmra.mxu0 %v19
  %v168 = vpop.f32.mrf.mxu0
  %v169 = vadd.f32 %v111, %v168
  %170 = vmatmul.f32.gmra.mxu0 %v21
  %v171 = vpop.f32.mrf.mxu0
  %v172 = vadd.f32 %v112, %v171
  %173 = vmatmul.f32.gmra.mxu0 %v23
  %v174 = vpop.f32.mrf.mxu0
  %v175 = vadd.f32 %v113, %v174
  %176 = vmatmul.f32.gmra.mxu0 %v25
  %v177 = vpop.f32.mrf.mxu0
  %v178 = vadd.f32 %v114, %v177
  %179 = vmatmul.f32.gmra.mxu0 %v27
  %v180 = vpop.f32.mrf.mxu0
  %v181 = vadd.f32 %v115, %v180
  %182 = vmatmul.f32.gmra.mxu0 %v29
  %v183 = vpop.f32.mrf.mxu0
  %v184 = vadd.f32 %v116, %v183
  %185 = vmatmul.f32.gmra.mxu0 %v31
  %v186 = vpop.f32.mrf.mxu0
  %v187 = vadd.f32 %v117, %v186
  %188 = vmatmul.f32.gmra.mxu0 %v33
  %v189 = vpop.f32.mrf.mxu0
  %v190 = vadd.f32 %v118, %v189
  %191 = vmatmul.f32.gmra.mxu0 %v35
  %v192 = vpop.f32.mrf.mxu0
  %v193 = vadd.f32 %v119, %v192
  %194 = vmatmul.f32.gmra.mxu0 %v37
  %v195 = vpop.f32.mrf.mxu0
  %v196 = vadd.f32 %v120, %v195
  %197 = vmatmul.f32.gmra.mxu0 %v39
  %v198 = vpop.f32.mrf.mxu0
  %v199 = vadd.f32 %v121, %v198
  %200 = vmatmul.f32.gmra.mxu0 %v41
  %v201 = vpop.f32.mrf.mxu0
  %v202 = vadd.f32 %v122, %v201
  %203 = vmatmul.f32.gmra.mxu0 %v43
  %v204 = vpop.f32.mrf.mxu0
  %v205 = vadd.f32 %v123, %v204
  %206 = vmatmul.f32.gmra.mxu0 %v45
  %v207 = vpop.f32.mrf.mxu0
  %v208 = vadd.f32 %v124, %v207
  %209 = vmatmul.f32.gmra.mxu0 %v47
  %v210 = vpop.f32.mrf.mxu0
  %v211 = vadd.f32 %v125, %v210
  %212 = vmatmul.f32.gmra.mxu0 %v49
  %v213 = vpop.f32.mrf.mxu0
  %v214 = vadd.f32 %v126, %v213
  %215 = vmatmul.f32.gmra.mxu0 %v51
  %v216 = vpop.f32.mrf.mxu0
  %v217 = vadd.f32 %v127, %v216
  %218 = vmatmul.f32.gmra.mxu0 %v53
  %v219 = vpop.f32.mrf.mxu0
  %v220 = vadd.f32 %v128, %v219
  %221 = vmatmul.f32.gmra.mxu0 %v55
  %v222 = vpop.f32.mrf.mxu0
  %v223 = vadd.f32 %v129, %v222
  %224 = vmatmul.f32.gmra.mxu0 %v57
  %v225 = vpop.f32.mrf.mxu0
  %v226 = vadd.f32 %v130, %v225
  %227 = vmatmul.f32.gmra.mxu0 %v59
  %v228 = vpop.f32.mrf.mxu0
  %v229 = vadd.f32 %v131, %v228
  %230 = vmatmul.f32.gmra.mxu0 %v61
  %v231 = vpop.f32.mrf.mxu0
  %v232 = vadd.f32 %v132, %v231
  %233 = vmatmul.f32.gmra.mxu0 %v63
  %v234 = vpop.f32.mrf.mxu0
  %v235 = vadd.f32 %v133, %v234
  %236 = vmatmul.f32.gmra.mxu0 %v65
  %v237 = vpop.f32.mrf.mxu0
  %v238 = vadd.f32 %v134, %v237
  %239 = vmatmul.f32.gmra.mxu0 %v67
  %v240 = vpop.f32.mrf.mxu0
  %v241 = vadd.f32 %v135, %v240
  %242 = vmatmul.f32.gmra.mxu0 %v69
  %v243 = vpop.f32.mrf.mxu0
  %v244 = vadd.f32 %v136, %v243
  %245 = vmatmul.f32.gmra.mxu0 %v71
  %v246 = vpop.f32.mrf.mxu0
  %v247 = vadd.f32 %v137, %v246
  %248 = vmatmul.f32.gmra.mxu0 %v73
  %v249 = vpop.f32.mrf.mxu0
  %v250 = vadd.f32 %v138, %v249
  %251 = vdwg.mxu0
  %252 = vmatpush.msra.mxu0 %v106
  %253 = vmatpush.msra.mxu0 %v105
  %254 = vmatpush.msra.mxu0 %v104
  %255 = vmatpush.msra.mxu0 %v103
  %256 = vmatpush.msra.mxu0 %v102
  %257 = vmatpush.msra.mxu0 %v101
  %258 = vmatpush.msra.mxu0 %v100
  %259 = vmatpush.msra.mxu0 %v99
  %260 = vmatpush.msra.mxu0 %v98
  %261 = vmatpush.msra.mxu0 %v97
  %262 = vmatpush.msra.mxu0 %v96
  %263 = vmatpush.msra.mxu0 %v95
  %264 = vmatpush.msra.mxu0 %v94
  %265 = vmatpush.msra.mxu0 %v93
  %266 = vmatpush.msra.mxu0 %v92
  %267 = vmatpush.msra.mxu0 %v91
  %268 = vmatmul.f32.gmra.mxu0 %v12
  %v269 = vpop.f32.mrf.mxu0
  %v270 = vadd.f32 %v157, %v269
  %271 = vmatmul.f32.gmra.mxu0 %v14
  %v272 = vpop.f32.mrf.mxu0
  %v273 = vadd.f32 %v160, %v272
  %274 = vmatmul.f32.gmra.mxu0 %v16
  %v275 = vpop.f32.mrf.mxu0
  %v276 = vadd.f32 %v163, %v275
  %277 = vmatmul.f32.gmra.mxu0 %v18
  %v278 = vpop.f32.mrf.mxu0
  %v279 = vadd.f32 %v166, %v278
  %280 = vmatmul.f32.gmra.mxu0 %v20
  %v281 = vpop.f32.mrf.mxu0
  %v282 = vadd.f32 %v169, %v281
  %283 = vmatmul.f32.gmra.mxu0 %v22
  %v284 = vpop.f32.mrf.mxu0
  %v285 = vadd.f32 %v172, %v284
  %286 = vmatmul.f32.gmra.mxu0 %v24
  %v287 = vpop.f32.mrf.mxu0
  %v288 = vadd.f32 %v175, %v287
  %289 = vmatmul.f32.gmra.mxu0 %v26
  %v290 = vpop.f32.mrf.mxu0
  %v291 = vadd.f32 %v178, %v290
  %292 = vmatmul.f32.gmra.mxu0 %v28
  %v293 = vpop.f32.mrf.mxu0
  %v294 = vadd.f32 %v181, %v293
  %295 = vmatmul.f32.gmra.mxu0 %v30
  %v296 = vpop.f32.mrf.mxu0
  %v297 = vadd.f32 %v184, %v296
  %298 = vmatmul.f32.gmra.mxu0 %v32
  %v299 = vpop.f32.mrf.mxu0
  %v300 = vadd.f32 %v187, %v299
  %301 = vmatmul.f32.gmra.mxu0 %v34
  %v302 = vpop.f32.mrf.mxu0
  %v303 = vadd.f32 %v190, %v302
  %304 = vmatmul.f32.gmra.mxu0 %v36
  %v305 = vpop.f32.mrf.mxu0
  %v306 = vadd.f32 %v193, %v305
  %307 = vmatmul.f32.gmra.mxu0 %v38
  %v308 = vpop.f32.mrf.mxu0
  %v309 = vadd.f32 %v196, %v308
  %310 = vmatmul.f32.gmra.mxu0 %v40
  %v311 = vpop.f32.mrf.mxu0
  %v312 = vadd.f32 %v199, %v311
  %313 = vmatmul.f32.gmra.mxu0 %v42
  %v314 = vpop.f32.mrf.mxu0
  %v315 = vadd.f32 %v202, %v314
  %316 = vmatmul.f32.gmra.mxu0 %v44
  %v317 = vpop.f32.mrf.mxu0
  %v318 = vadd.f32 %v205, %v317
  %319 = vmatmul.f32.gmra.mxu0 %v46
  %v320 = vpop.f32.mrf.mxu0
  %v321 = vadd.f32 %v208, %v320
  %322 = vmatmul.f32.gmra.mxu0 %v48
  %v323 = vpop.f32.mrf.mxu0
  %v324 = vadd.f32 %v211, %v323
  %325 = vmatmul.f32.gmra.mxu0 %v50
  %v326 = vpop.f32.mrf.mxu0
  %v327 = vadd.f32 %v214, %v326
  %328 = vmatmul.f32.gmra.mxu0 %v52
  %v329 = vpop.f32.mrf.mxu0
  %v330 = vadd.f32 %v217, %v329
  %331 = vmatmul.f32.gmra.mxu0 %v54
  %v332 = vpop.f32.mrf.mxu0
  %v333 = vadd.f32 %v220, %v332
  %334 = vmatmul.f32.gmra.mxu0 %v56
  %v335 = vpop.f32.mrf.mxu0
  %v336 = vadd.f32 %v223, %v335
  %337 = vmatmul.f32.gmra.mxu0 %v58
  %v338 = vpop.f32.mrf.mxu0
  %v339 = vadd.f32 %v226, %v338
  %340 = vmatmul.f32.gmra.mxu0 %v60
  %v341 = vpop.f32.mrf.mxu0
  %v342 = vadd.f32 %v229, %v341
  %343 = vmatmul.f32.gmra.mxu0 %v62
  %v344 = vpop.f32.mrf.mxu0
  %v345 = vadd.f32 %v232, %v344
  %346 = vmatmul.f32.gmra.mxu0 %v64
  %v347 = vpop.f32.mrf.mxu0
  %v348 = vadd.f32 %v235, %v347
  %349 = vmatmul.f32.gmra.mxu0 %v66
  %v350 = vpop.f32.mrf.mxu0
  %v351 = vadd.f32 %v238, %v350
  %352 = vmatmul.f32.gmra.mxu0 %v68
  %v353 = vpop.f32.mrf.mxu0
  %v354 = vadd.f32 %v241, %v353
  %355 = vmatmul.f32.gmra.mxu0 %v70
  %v356 = vpop.f32.mrf.mxu0
  %v357 = vadd.f32 %v244, %v356
  %358 = vmatmul.f32.gmra.mxu0 %v72
  %v359 = vpop.f32.mrf.mxu0
  %v360 = vadd.f32 %v247, %v359
  %361 = vmatmul.f32.gmra.mxu0 %v74
  %v362 = vpop.f32.mrf.mxu0
  %v363 = vadd.f32 %v250, %v362
  %364 = vdwg.mxu0
  %v365 = vmax.f32 %v270, 0.0
  %v366 = vmax.f32 %v273, 0.0
  %v367 = vmax.f32 %v276, 0.0
  %v368 = vmax.f32 %v279, 0.0
  %v369 = vmax.f32 %v282, 0.0
  %v370 = vmax.f32 %v285, 0.0
  %v371 = vmax.f32 %v288, 0.0
  %v372 = vmax.f32 %v291, 0.0
  %v373 = vmax.f32 %v294, 0.0
  %v374 = vmax.f32 %v297, 0.0
  %v375 = vmax.f32 %v300, 0.0
  %v376 = vmax.f32 %v303, 0.0
  %v377 = vmax.f32 %v306, 0.0
  %v378 = vmax.f32 %v309, 0.0
  %v379 = vmax.f32 %v312, 0.0
  %v380 = vmax.f32 %v315, 0.0
  %v381 = vmax.f32 %v318, 0.0
  %v382 = vmax.f32 %v321, 0.0
  %v383 = vmax.f32 %v324, 0.0
  %v384 = vmax.f32 %v327, 0.0
  %v385 = vmax.f32 %v330, 0.0
  %v386 = vmax.f32 %v333, 0.0
  %v387 = vmax.f32 %v336, 0.0
  %v388 = vmax.f32 %v339, 0.0
  %v389 = vmax.f32 %v342, 0.0
  %v390 = vmax.f32 %v345, 0.0
  %v391 = vmax.f32 %v348, 0.0
  %v392 = vmax.f32 %v351, 0.0
  %v393 = vmax.f32 %v354, 0.0
  %v394 = vmax.f32 %v357, 0.0
  %v395 = vmax.f32 %v360, 0.0
  %v396 = vmax.f32 %v363, 0.0
  %v397 = vmin.f32 %v365, 1.0
  %v398 = vmin.f32 %v366, 1.0
  %v399 = vmin.f32 %v367, 1.0
  %v400 = vmin.f32 %v368, 1.0
  %v401 = vmin.f32 %v369, 1.0
  %v402 = vmin.f32 %v370, 1.0
  %v403 = vmin.f32 %v371, 1.0
  %v404 = vmin.f32 %v372, 1.0
  %v405 = vmin.f32 %v373, 1.0
  %v406 = vmin.f32 %v374, 1.0
  %v407 = vmin.f32 %v375, 1.0
  %v408 = vmin.f32 %v376, 1.0
  %v409 = vmin.f32 %v377, 1.0
  %v410 = vmin.f32 %v378, 1.0
  %v411 = vmin.f32 %v379, 1.0
  %v412 = vmin.f32 %v380, 1.0
  %v413 = vmin.f32 %v381, 1.0
  %v414 = vmin.f32 %v382, 1.0
  %v415 = vmin.f32 %v383, 1.0
  %v416 = vmin.f32 %v384, 1.0
  %v417 = vmin.f32 %v385, 1.0
  %v418 = vmin.f32 %v386, 1.0
  %v419 = vmin.f32 %v387, 1.0
  %v420 = vmin.f32 %v388, 1.0
  %v421 = vmin.f32 %v389, 1.0
  %v422 = vmin.f32 %v390, 1.0
  %v423 = vmin.f32 %v391, 1.0
  %v424 = vmin.f32 %v392, 1.0
  %v425 = vmin.f32 %v393, 1.0
  %v426 = vmin.f32 %v394, 1.0
  %v427 = vmin.f32 %v395, 1.0
  %v428 = vmin.f32 %v396, 1.0
  %429 = vmatpush.msra.mxu0 %v412
  %430 = vmatpush.msra.mxu0 %v411
  %431 = vmatpush.msra.mxu0 %v410
  %432 = vmatpush.msra.mxu0 %v409
  %433 = vmatpush.msra.mxu0 %v408
  %434 = vmatpush.msra.mxu0 %v407
  %435 = vmatpush.msra.mxu0 %v406
  %436 = vmatpush.msra.mxu0 %v405
  %437 = vmatpush.msra.mxu0 %v404
  %438 = vmatpush.msra.mxu0 %v403
  %439 = vmatpush.msra.mxu0 %v402
  %440 = vmatpush.msra.mxu0 %v401
  %441 = vmatpush.msra.mxu0 %v400
  %442 = vmatpush.msra.mxu0 %v399
  %443 = vmatpush.msra.mxu0 %v398
  %444 = vmatpush.msra.mxu0 %v397
  %445 = vmatmul.f32.gmra.mxu0 %v11
  %v446 = vpop.f32.mrf.mxu0
  %v447 = vadd.f32 %v107, %v446
  %448 = vmatmul.f32.gmra.mxu0 %v13
  %v449 = vpop.f32.mrf.mxu0
  %v450 = vadd.f32 %v108, %v449
  %451 = vmatmul.f32.gmra.mxu0 %v15
  %v452 = vpop.f32.mrf.mxu0
  %v453 = vadd.f32 %v109, %v452
  %454 = vmatmul.f32.gmra.mxu0 %v17
  %v455 = vpop.f32.mrf.mxu0
  %v456 = vadd.f32 %v110, %v455
  %457 = vmatmul.f32.gmra.mxu0 %v19
  %v458 = vpop.f32.mrf.mxu0
  %v459 = vadd.f32 %v111, %v458
  %460 = vmatmul.f32.gmra.mxu0 %v21
  %v461 = vpop.f32.mrf.mxu0
  %v462 = vadd.f32 %v112, %v461
  %463 = vmatmul.f32.gmra.mxu0 %v23
  %v464 = vpop.f32.mrf.mxu0
  %v465 = vadd.f32 %v113, %v464
  %466 = vmatmul.f32.gmra.mxu0 %v25
  %v467 = vpop.f32.mrf.mxu0
  %v468 = vadd.f32 %v114, %v467
  %469 = vmatmul.f32.gmra.mxu0 %v27
  %v470 = vpop.f32.mrf.mxu0
  %v471 = vadd.f32 %v115, %v470
  %472 = vmatmul.f32.gmra.mxu0 %v29
  %v473 = vpop.f32.mrf.mxu0
  %v474 = vadd.f32 %v116, %v473
  %475 = vmatmul.f32.gmra.mxu0 %v31
  %v476 = vpop.f32.mrf.mxu0
  %v477 = vadd.f32 %v117, %v476
  %478 = vmatmul.f32.gmra.mxu0 %v33
  %v479 = vpop.f32.mrf.mxu0
  %v480 = vadd.f32 %v118, %v479
  %481 = vmatmul.f32.gmra.mxu0 %v35
  %v482 = vpop.f32.mrf.mxu0
  %v483 = vadd.f32 %v119, %v482
  %484 = vmatmul.f32.gmra.mxu0 %v37
  %v485 = vpop.f32.mrf.mxu0
  %v486 = vadd.f32 %v120, %v485
  %487 = vmatmul.f32.gmra.mxu0 %v39
  %v488 = vpop.f32.mrf.mxu0
  %v489 = vadd.f32 %v121, %v488
  %490 = vmatmul.f32.gmra.mxu0 %v41
  %v491 = vpop.f32.mrf.mxu0
  %v492 = vadd.f32 %v122, %v491
  %493 = vmatmul.f32.gmra.mxu0 %v43
  %v494 = vpop.f32.mrf.mxu0
  %v495 = vadd.f32 %v123, %v494
  %496 = vmatmul.f32.gmra.mxu0 %v45
  %v497 = vpop.f32.mrf.mxu0
  %v498 = vadd.f32 %v124, %v497
  %499 = vmatmul.f32.gmra.mxu0 %v47
  %v500 = vpop.f32.mrf.mxu0
  %v501 = vadd.f32 %v125, %v500
  %502 = vmatmul.f32.gmra.mxu0 %v49
  %v503 = vpop.f32.mrf.mxu0
  %v504 = vadd.f32 %v126, %v503
  %505 = vmatmul.f32.gmra.mxu0 %v51
  %v506 = vpop.f32.mrf.mxu0
  %v507 = vadd.f32 %v127, %v506
  %508 = vmatmul.f32.gmra.mxu0 %v53
  %v509 = vpop.f32.mrf.mxu0
  %v510 = vadd.f32 %v128, %v509
  %511 = vmatmul.f32.gmra.mxu0 %v55
  %v512 = vpop.f32.mrf.mxu0
  %v513 = vadd.f32 %v129, %v512
  %514 = vmatmul.f32.gmra.mxu0 %v57
  %v515 = vpop.f32.mrf.mxu0
  %v516 = vadd.f32 %v130, %v515
  %517 = vmatmul.f32.gmra.mxu0 %v59
  %v518 = vpop.f32.mrf.mxu0
  %v519 = vadd.f32 %v131, %v518
  %520 = vmatmul.f32.gmra.mxu0 %v61
  %v521 = vpop.f32.mrf.mxu0
  %v522 = vadd.f32 %v132, %v521
  %523 = vmatmul.f32.gmra.mxu0 %v63
  %v524 = vpop.f32.mrf.mxu0
  %v525 = vadd.f32 %v133, %v524
  %526 = vmatmul.f32.gmra.mxu0 %v65
  %v527 = vpop.f32.mrf.mxu0
  %v528 = vadd.f32 %v134, %v527
  %529 = vmatmul.f32.gmra.mxu0 %v67
  %v530 = vpop.f32.mrf.mxu0
  %v531 = vadd.f32 %v135, %v530
  %532 = vmatmul.f32.gmra.mxu0 %v69
  %v533 = vpop.f32.mrf.mxu0
  %v534 = vadd.f32 %v136, %v533
  %535 = vmatmul.f32.gmra.mxu0 %v71
  %v536 = vpop.f32.mrf.mxu0
  %v537 = vadd.f32 %v137, %v536
  %538 = vmatmul.f32.gmra.mxu0 %v73
  %v539 = vpop.f32.mrf.mxu0
  %v540 = vadd.f32 %v138, %v539
  %541 = vdwg.mxu0
  %542 = vmatpush.msra.mxu0 %v428
  %543 = vmatpush.msra.mxu0 %v427
  %544 = vmatpush.msra.mxu0 %v426
  %545 = vmatpush.msra.mxu0 %v425
  %546 = vmatpush.msra.mxu0 %v424
  %547 = vmatpush.msra.mxu0 %v423
  %548 = vmatpush.msra.mxu0 %v422
  %549 = vmatpush.msra.mxu0 %v421
  %550 = vmatpush.msra.mxu0 %v420
  %551 = vmatpush.msra.mxu0 %v419
  %552 = vmatpush.msra.mxu0 %v418
  %553 = vmatpush.msra.mxu0 %v417
  %554 = vmatpush.msra.mxu0 %v416
  %555 = vmatpush.msra.mxu0 %v415
  %556 = vmatpush.msra.mxu0 %v414
  %557 = vmatpush.msra.mxu0 %v413
  %558 = vmatmul.f32.gmra.mxu0 %v12
  %v559 = vpop.f32.mrf.mxu0
  %v560 = vadd.f32 %v447, %v559
  %561 = vmatmul.f32.gmra.mxu0 %v14
  %v562 = vpop.f32.mrf.mxu0
  %v563 = vadd.f32 %v450, %v562
  %564 = vmatmul.f32.gmra.mxu0 %v16
  %v565 = vpop.f32.mrf.mxu0
  %v566 = vadd.f32 %v453, %v565
  %567 = vmatmul.f32.gmra.mxu0 %v18
  %v568 = vpop.f32.mrf.mxu0
  %v569 = vadd.f32 %v456, %v568
  %570 = vmatmul.f32.gmra.mxu0 %v20
  %v571 = vpop.f32.mrf.mxu0
  %v572 = vadd.f32 %v459, %v571
  %573 = vmatmul.f32.gmra.mxu0 %v22
  %v574 = vpop.f32.mrf.mxu0
  %v575 = vadd.f32 %v462, %v574
  %576 = vmatmul.f32.gmra.mxu0 %v24
  %v577 = vpop.f32.mrf.mxu0
  %v578 = vadd.f32 %v465, %v577
  %579 = vmatmul.f32.gmra.mxu0 %v26
  %v580 = vpop.f32.mrf.mxu0
  %v581 = vadd.f32 %v468, %v580
  %582 = vmatmul.f32.gmra.mxu0 %v28
  %v583 = vpop.f32.mrf.mxu0
  %v584 = vadd.f32 %v471, %v583
  %585 = vmatmul.f32.gmra.mxu0 %v30
  %v586 = vpop.f32.mrf.mxu0
  %v587 = vadd.f32 %v474, %v586
  %588 = vmatmul.f32.gmra.mxu0 %v32
  %v589 = vpop.f32.mrf.mxu0
  %v590 = vadd.f32 %v477, %v589
  %591 = vmatmul.f32.gmra.mxu0 %v34
  %v592 = vpop.f32.mrf.mxu0
  %v593 = vadd.f32 %v480, %v592
  %594 = vmatmul.f32.gmra.mxu0 %v36
  %v595 = vpop.f32.mrf.mxu0
  %v596 = vadd.f32 %v483, %v595
  %597 = vmatmul.f32.gmra.mxu0 %v38
  %v598 = vpop.f32.mrf.mxu0
  %v599 = vadd.f32 %v486, %v598
  %600 = vmatmul.f32.gmra.mxu0 %v40
  %v601 = vpop.f32.mrf.mxu0
  %v602 = vadd.f32 %v489, %v601
  %603 = vmatmul.f32.gmra.mxu0 %v42
  %v604 = vpop.f32.mrf.mxu0
  %v605 = vadd.f32 %v492, %v604
  %606 = vmatmul.f32.gmra.mxu0 %v44
  %v607 = vpop.f32.mrf.mxu0
  %v608 = vadd.f32 %v495, %v607
  %609 = vmatmul.f32.gmra.mxu0 %v46
  %v610 = vpop.f32.mrf.mxu0
  %v611 = vadd.f32 %v498, %v610
  %612 = vmatmul.f32.gmra.mxu0 %v48
  %v613 = vpop.f32.mrf.mxu0
  %v614 = vadd.f32 %v501, %v613
  %615 = vmatmul.f32.gmra.mxu0 %v50
  %v616 = vpop.f32.mrf.mxu0
  %v617 = vadd.f32 %v504, %v616
  %618 = vmatmul.f32.gmra.mxu0 %v52
  %v619 = vpop.f32.mrf.mxu0
  %v620 = vadd.f32 %v507, %v619
  %621 = vmatmul.f32.gmra.mxu0 %v54
  %v622 = vpop.f32.mrf.mxu0
  %v623 = vadd.f32 %v510, %v622
  %624 = vmatmul.f32.gmra.mxu0 %v56
  %v625 = vpop.f32.mrf.mxu0
  %v626 = vadd.f32 %v513, %v625
  %627 = vmatmul.f32.gmra.mxu0 %v58
  %v628 = vpop.f32.mrf.mxu0
  %v629 = vadd.f32 %v516, %v628
  %630 = vmatmul.f32.gmra.mxu0 %v60
  %v631 = vpop.f32.mrf.mxu0
  %v632 = vadd.f32 %v519, %v631
  %633 = vmatmul.f32.gmra.mxu0 %v62
  %v634 = vpop.f32.mrf.mxu0
  %v635 = vadd.f32 %v522, %v634
  %636 = vmatmul.f32.gmra.mxu0 %v64
  %v637 = vpop.f32.mrf.mxu0
  %v638 = vadd.f32 %v525, %v637
  %639 = vmatmul.f32.gmra.mxu0 %v66
  %v640 = vpop.f32.mrf.mxu0
  %v641 = vadd.f32 %v528, %v640
  %642 = vmatmul.f32.gmra.mxu0 %v68
  %v643 = vpop.f32.mrf.mxu0
  %v644 = vadd.f32 %v531, %v643
  %645 = vmatmul.f32.gmra.mxu0 %v70
  %v646 = vpop.f32.mrf.mxu0
  %v647 = vadd.f32 %v534, %v646
  %648 = vmatmul.f32.gmra.mxu0 %v72
  %v649 = vpop.f32.mrf.mxu0
  %v650 = vadd.f32 %v537, %v649
  %651 = vmatmul.f32.gmra.mxu0 %v74
  %v652 = vpop.f32.mrf.mxu0
  %v653 = vadd.f32 %v540, %v652
  %654 = vdwg.mxu0
  %v655 = vmax.f32 %v560, 0.0
  %v656 = vmax.f32 %v563, 0.0
  %v657 = vmax.f32 %v566, 0.0
  %v658 = vmax.f32 %v569, 0.0
  %v659 = vmax.f32 %v572, 0.0
  %v660 = vmax.f32 %v575, 0.0
  %v661 = vmax.f32 %v578, 0.0
  %v662 = vmax.f32 %v581, 0.0
  %v663 = vmax.f32 %v584, 0.0
  %v664 = vmax.f32 %v587, 0.0
  %v665 = vmax.f32 %v590, 0.0
  %v666 = vmax.f32 %v593, 0.0
  %v667 = vmax.f32 %v596, 0.0
  %v668 = vmax.f32 %v599, 0.0
  %v669 = vmax.f32 %v602, 0.0
  %v670 = vmax.f32 %v605, 0.0
  %v671 = vmax.f32 %v608, 0.0
  %v672 = vmax.f32 %v611, 0.0
  %v673 = vmax.f32 %v614, 0.0
  %v674 = vmax.f32 %v617, 0.0
  %v675 = vmax.f32 %v620, 0.0
  %v676 = vmax.f32 %v623, 0.0
  %v677 = vmax.f32 %v626, 0.0
  %v678 = vmax.f32 %v629, 0.0
  %v679 = vmax.f32 %v632, 0.0
  %v680 = vmax.f32 %v635, 0.0
  %v681 = vmax.f32 %v638, 0.0
  %v682 = vmax.f32 %v641, 0.0
  %v683 = vmax.f32 %v644, 0.0
  %v684 = vmax.f32 %v647, 0.0
  %v685 = vmax.f32 %v650, 0.0
  %v686 = vmax.f32 %v653, 0.0
  %v687 = vmin.f32 %v655, 1.0
  %v688 = vmin.f32 %v656, 1.0
  %v689 = vmin.f32 %v657, 1.0
  %v690 = vmin.f32 %v658, 1.0
  %v691 = vmin.f32 %v659, 1.0
  %v692 = vmin.f32 %v660, 1.0
  %v693 = vmin.f32 %v661, 1.0
  %v694 = vmin.f32 %v662, 1.0
  %v695 = vmin.f32 %v663, 1.0
  %v696 = vmin.f32 %v664, 1.0
  %v697 = vmin.f32 %v665, 1.0
  %v698 = vmin.f32 %v666, 1.0
  %v699 = vmin.f32 %v667, 1.0
  %v700 = vmin.f32 %v668, 1.0
  %v701 = vmin.f32 %v669, 1.0
  %v702 = vmin.f32 %v670, 1.0
  %v703 = vmin.f32 %v671, 1.0
  %v704 = vmin.f32 %v672, 1.0
  %v705 = vmin.f32 %v673, 1.0
  %v706 = vmin.f32 %v674, 1.0
  %v707 = vmin.f32 %v675, 1.0
  %v708 = vmin.f32 %v676, 1.0
  %v709 = vmin.f32 %v677, 1.0
  %v710 = vmin.f32 %v678, 1.0
  %v711 = vmin.f32 %v679, 1.0
  %v712 = vmin.f32 %v680, 1.0
  %v713 = vmin.f32 %v681, 1.0
  %v714 = vmin.f32 %v682, 1.0
  %v715 = vmin.f32 %v683, 1.0
  %v716 = vmin.f32 %v684, 1.0
  %v717 = vmin.f32 %v685, 1.0
  %v718 = vmin.f32 %v686, 1.0
  %719 = vmatpush.msra.mxu0 %v702
  %720 = vmatpush.msra.mxu0 %v701
  %721 = vmatpush.msra.mxu0 %v700
  %722 = vmatpush.msra.mxu0 %v699
  %723 = vmatpush.msra.mxu0 %v698
  %724 = vmatpush.msra.mxu0 %v697
  %725 = vmatpush.msra.mxu0 %v696
  %726 = vmatpush.msra.mxu0 %v695
  %727 = vmatpush.msra.mxu0 %v694
  %728 = vmatpush.msra.mxu0 %v693
  %729 = vmatpush.msra.mxu0 %v692
  %730 = vmatpush.msra.mxu0 %v691
  %731 = vmatpush.msra.mxu0 %v690
  %732 = vmatpush.msra.mxu0 %v689
  %733 = vmatpush.msra.mxu0 %v688
  %734 = vmatpush.msra.mxu0 %v687
  %735 = vmatmul.f32.gmra.mxu0 %v11
  %v736 = vpop.f32.mrf.mxu0
  %v737 = vadd.f32 %v107, %v736
  %738 = vmatmul.f32.gmra.mxu0 %v13
  %v739 = vpop.f32.mrf.mxu0
  %v740 = vadd.f32 %v108, %v739
  %741 = vmatmul.f32.gmra.mxu0 %v15
  %v742 = vpop.f32.mrf.mxu0
  %v743 = vadd.f32 %v109, %v742
  %744 = vmatmul.f32.gmra.mxu0 %v17
  %v745 = vpop.f32.mrf.mxu0
  %v746 = vadd.f32 %v110, %v745
  %747 = vmatmul.f32.gmra.mxu0 %v19
  %v748 = vpop.f32.mrf.mxu0
  %v749 = vadd.f32 %v111, %v748
  %750 = vmatmul.f32.gmra.mxu0 %v21
  %v751 = vpop.f32.mrf.mxu0
  %v752 = vadd.f32 %v112, %v751
  %753 = vmatmul.f32.gmra.mxu0 %v23
  %v754 = vpop.f32.mrf.mxu0
  %v755 = vadd.f32 %v113, %v754
  %756 = vmatmul.f32.gmra.mxu0 %v25
  %v757 = vpop.f32.mrf.mxu0
  %v758 = vadd.f32 %v114, %v757
  %759 = vmatmul.f32.gmra.mxu0 %v27
  %v760 = vpop.f32.mrf.mxu0
  %v761 = vadd.f32 %v115, %v760
  %762 = vmatmul.f32.gmra.mxu0 %v29
  %v763 = vpop.f32.mrf.mxu0
  %v764 = vadd.f32 %v116, %v763
  %765 = vmatmul.f32.gmra.mxu0 %v31
  %v766 = vpop.f32.mrf.mxu0
  %v767 = vadd.f32 %v117, %v766
  %768 = vmatmul.f32.gmra.mxu0 %v33
  %v769 = vpop.f32.mrf.mxu0
  %v770 = vadd.f32 %v118, %v769
  %771 = vmatmul.f32.gmra.mxu0 %v35
  %v772 = vpop.f32.mrf.mxu0
  %v773 = vadd.f32 %v119, %v772
  %774 = vmatmul.f32.gmra.mxu0 %v37
  %v775 = vpop.f32.mrf.mxu0
  %v776 = vadd.f32 %v120, %v775
  %777 = vmatmul.f32.gmra.mxu0 %v39
  %v778 = vpop.f32.mrf.mxu0
  %v779 = vadd.f32 %v121, %v778
  %780 = vmatmul.f32.gmra.mxu0 %v41
  %v781 = vpop.f32.mrf.mxu0
  %v782 = vadd.f32 %v122, %v781
  %783 = vmatmul.f32.gmra.mxu0 %v43
  %v784 = vpop.f32.mrf.mxu0
  %v785 = vadd.f32 %v123, %v784
  %786 = vmatmul.f32.gmra.mxu0 %v45
  %v787 = vpop.f32.mrf.mxu0
  %v788 = vadd.f32 %v124, %v787
  %789 = vmatmul.f32.gmra.mxu0 %v47
  %v790 = vpop.f32.mrf.mxu0
  %v791 = vadd.f32 %v125, %v790
  %792 = vmatmul.f32.gmra.mxu0 %v49
  %v793 = vpop.f32.mrf.mxu0
  %v794 = vadd.f32 %v126, %v793
  %795 = vmatmul.f32.gmra.mxu0 %v51
  %v796 = vpop.f32.mrf.mxu0
  %v797 = vadd.f32 %v127, %v796
  %798 = vmatmul.f32.gmra.mxu0 %v53
  %v799 = vpop.f32.mrf.mxu0
  %v800 = vadd.f32 %v128, %v799
  %801 = vmatmul.f32.gmra.mxu0 %v55
  %v802 = vpop.f32.mrf.mxu0
  %v803 = vadd.f32 %v129, %v802
  %804 = vmatmul.f32.gmra.mxu0 %v57
  %v805 = vpop.f32.mrf.mxu0
  %v806 = vadd.f32 %v130, %v805
  %807 = vmatmul.f32.gmra.mxu0 %v59
  %v808 = vpop.f32.mrf.mxu0
  %v809 = vadd.f32 %v131, %v808
  %810 = vmatmul.f32.gmra.mxu0 %v61
  %v811 = vpop.f32.mrf.mxu0
  %v812 = vadd.f32 %v132, %v811
  %813 = vmatmul.f32.gmra.mxu0 %v63
  %v814 = vpop.f32.mrf.mxu0
  %v815 = vadd.f32 %v133, %v814
  %816 = vmatmul.f32.gmra.mxu0 %v65
  %v817 = vpop.f32.mrf.mxu0
  %v818 = vadd.f32 %v134, %v817
  %819 = vmatmul.f32.gmra.mxu0 %v67
  %v820 = vpop.f32.mrf.mxu0
  %v821 = vadd.f32 %v135, %v820
  %822 = vmatmul.f32.gmra.mxu0 %v69
  %v823 = vpop.f32.mrf.mxu0
  %v824 = vadd.f32 %v136, %v823
  %825 = vmatmul.f32.gmra.mxu0 %v71
  %v826 = vpop.f32.mrf.mxu0
  %v827 = vadd.f32 %v137, %v826
  %828 = vmatmul.f32.gmra.mxu0 %v73
  %v829 = vpop.f32.mrf.mxu0
  %v830 = vadd.f32 %v138, %v829
  %831 = vdwg.mxu0
  %832 = vmatpush.msra.mxu0 %v718
  %833 = vmatpush.msra.mxu0 %v717
  %834 = vmatpush.msra.mxu0 %v716
  %835 = vmatpush.msra.mxu0 %v715
  %836 = vmatpush.msra.mxu0 %v714
  %837 = vmatpush.msra.mxu0 %v713
  %838 = vmatpush.msra.mxu0 %v712
  %839 = vmatpush.msra.mxu0 %v711
  %840 = vmatpush.msra.mxu0 %v710
  %841 = vmatpush.msra.mxu0 %v709
  %842 = vmatpush.msra.mxu0 %v708
  %843 = vmatpush.msra.mxu0 %v707
  %844 = vmatpush.msra.mxu0 %v706
  %845 = vmatpush.msra.mxu0 %v705
  %846 = vmatpush.msra.mxu0 %v704
  %847 = vmatpush.msra.mxu0 %v703
  %848 = vmatmul.f32.gmra.mxu0 %v12
  %v849 = vpop.f32.mrf.mxu0
  %v850 = vadd.f32 %v737, %v849
  %851 = vmatmul.f32.gmra.mxu0 %v14
  %v852 = vpop.f32.mrf.mxu0
  %v853 = vadd.f32 %v740, %v852
  %854 = vmatmul.f32.gmra.mxu0 %v16
  %v855 = vpop.f32.mrf.mxu0
  %v856 = vadd.f32 %v743, %v855
  %857 = vmatmul.f32.gmra.mxu0 %v18
  %v858 = vpop.f32.mrf.mxu0
  %v859 = vadd.f32 %v746, %v858
  %860 = vmatmul.f32.gmra.mxu0 %v20
  %v861 = vpop.f32.mrf.mxu0
  %v862 = vadd.f32 %v749, %v861
  %863 = vmatmul.f32.gmra.mxu0 %v22
  %v864 = vpop.f32.mrf.mxu0
  %v865 = vadd.f32 %v752, %v864
  %866 = vmatmul.f32.gmra.mxu0 %v24
  %v867 = vpop.f32.mrf.mxu0
  %v868 = vadd.f32 %v755, %v867
  %869 = vmatmul.f32.gmra.mxu0 %v26
  %v870 = vpop.f32.mrf.mxu0
  %v871 = vadd.f32 %v758, %v870
  %872 = vmatmul.f32.gmra.mxu0 %v28
  %v873 = vpop.f32.mrf.mxu0
  %v874 = vadd.f32 %v761, %v873
  %875 = vmatmul.f32.gmra.mxu0 %v30
  %v876 = vpop.f32.mrf.mxu0
  %v877 = vadd.f32 %v764, %v876
  %878 = vmatmul.f32.gmra.mxu0 %v32
  %v879 = vpop.f32.mrf.mxu0
  %v880 = vadd.f32 %v767, %v879
  %881 = vmatmul.f32.gmra.mxu0 %v34
  %v882 = vpop.f32.mrf.mxu0
  %v883 = vadd.f32 %v770, %v882
  %884 = vmatmul.f32.gmra.mxu0 %v36
  %v885 = vpop.f32.mrf.mxu0
  %v886 = vadd.f32 %v773, %v885
  %887 = vmatmul.f32.gmra.mxu0 %v38
  %v888 = vpop.f32.mrf.mxu0
  %v889 = vadd.f32 %v776, %v888
  %890 = vmatmul.f32.gmra.mxu0 %v40
  %v891 = vpop.f32.mrf.mxu0
  %v892 = vadd.f32 %v779, %v891
  %893 = vmatmul.f32.gmra.mxu0 %v42
  %v894 = vpop.f32.mrf.mxu0
  %v895 = vadd.f32 %v782, %v894
  %896 = vmatmul.f32.gmra.mxu0 %v44
  %v897 = vpop.f32.mrf.mxu0
  %v898 = vadd.f32 %v785, %v897
  %899 = vmatmul.f32.gmra.mxu0 %v46
  %v900 = vpop.f32.mrf.mxu0
  %v901 = vadd.f32 %v788, %v900
  %902 = vmatmul.f32.gmra.mxu0 %v48
  %v903 = vpop.f32.mrf.mxu0
  %v904 = vadd.f32 %v791, %v903
  %905 = vmatmul.f32.gmra.mxu0 %v50
  %v906 = vpop.f32.mrf.mxu0
  %v907 = vadd.f32 %v794, %v906
  %908 = vmatmul.f32.gmra.mxu0 %v52
  %v909 = vpop.f32.mrf.mxu0
  %v910 = vadd.f32 %v797, %v909
  %911 = vmatmul.f32.gmra.mxu0 %v54
  %v912 = vpop.f32.mrf.mxu0
  %v913 = vadd.f32 %v800, %v912
  %914 = vmatmul.f32.gmra.mxu0 %v56
  %v915 = vpop.f32.mrf.mxu0
  %v916 = vadd.f32 %v803, %v915
  %917 = vmatmul.f32.gmra.mxu0 %v58
  %v918 = vpop.f32.mrf.mxu0
  %v919 = vadd.f32 %v806, %v918
  %920 = vmatmul.f32.gmra.mxu0 %v60
  %v921 = vpop.f32.mrf.mxu0
  %v922 = vadd.f32 %v809, %v921
  %923 = vmatmul.f32.gmra.mxu0 %v62
  %v924 = vpop.f32.mrf.mxu0
  %v925 = vadd.f32 %v812, %v924
  %926 = vmatmul.f32.gmra.mxu0 %v64
  %v927 = vpop.f32.mrf.mxu0
  %v928 = vadd.f32 %v815, %v927
  %929 = vmatmul.f32.gmra.mxu0 %v66
  %v930 = vpop.f32.mrf.mxu0
  %v931 = vadd.f32 %v818, %v930
  %932 = vmatmul.f32.gmra.mxu0 %v68
  %v933 = vpop.f32.mrf.mxu0
  %v934 = vadd.f32 %v821, %v933
  %935 = vmatmul.f32.gmra.mxu0 %v70
  %v936 = vpop.f32.mrf.mxu0
  %v937 = vadd.f32 %v824, %v936
  %938 = vmatmul.f32.gmra.mxu0 %v72
  %v939 = vpop.f32.mrf.mxu0
  %v940 = vadd.f32 %v827, %v939
  %941 = vmatmul.f32.gmra.mxu0 %v74
  %v942 = vpop.f32.mrf.mxu0
  %v943 = vadd.f32 %v830, %v942
  %944 = vdwg.mxu0
  %v945 = vmax.f32 %v850, 0.0
  %v946 = vmax.f32 %v853, 0.0
  %v947 = vmax.f32 %v856, 0.0
  %v948 = vmax.f32 %v859, 0.0
  %v949 = vmax.f32 %v862, 0.0
  %v950 = vmax.f32 %v865, 0.0
  %v951 = vmax.f32 %v868, 0.0
  %v952 = vmax.f32 %v871, 0.0
  %v953 = vmax.f32 %v874, 0.0
  %v954 = vmax.f32 %v877, 0.0
  %v955 = vmax.f32 %v880, 0.0
  %v956 = vmax.f32 %v883, 0.0
  %v957 = vmax.f32 %v886, 0.0
  %v958 = vmax.f32 %v889, 0.0
  %v959 = vmax.f32 %v892, 0.0
  %v960 = vmax.f32 %v895, 0.0
  %v961 = vmax.f32 %v898, 0.0
  %v962 = vmax.f32 %v901, 0.0
  %v963 = vmax.f32 %v904, 0.0
  %v964 = vmax.f32 %v907, 0.0
  %v965 = vmax.f32 %v910, 0.0
  %v966 = vmax.f32 %v913, 0.0
  %v967 = vmax.f32 %v916, 0.0
  %v968 = vmax.f32 %v919, 0.0
  %v969 = vmax.f32 %v922, 0.0
  %v970 = vmax.f32 %v925, 0.0
  %v971 = vmax.f32 %v928, 0.0
  %v972 = vmax.f32 %v931, 0.0
  %v973 = vmax.f32 %v934, 0.0
  %v974 = vmax.f32 %v937, 0.0
  %v975 = vmax.f32 %v940, 0.0
  %v976 = vmax.f32 %v943, 0.0
  %v977 = vmin.f32 %v945, 1.0
  %v978 = vmin.f32 %v946, 1.0
  %v979 = vmin.f32 %v947, 1.0
  %v980 = vmin.f32 %v948, 1.0
  %v981 = vmin.f32 %v949, 1.0
  %v982 = vmin.f32 %v950, 1.0
  %v983 = vmin.f32 %v951, 1.0
  %v984 = vmin.f32 %v952, 1.0
  %v985 = vmin.f32 %v953, 1.0
  %v986 = vmin.f32 %v954, 1.0
  %v987 = vmin.f32 %v955, 1.0
  %v988 = vmin.f32 %v956, 1.0
  %v989 = vmin.f32 %v957, 1.0
  %v990 = vmin.f32 %v958, 1.0
  %v991 = vmin.f32 %v959, 1.0
  %v992 = vmin.f32 %v960, 1.0
  %v993 = vmin.f32 %v961, 1.0
  %v994 = vmin.f32 %v962, 1.0
  %v995 = vmin.f32 %v963, 1.0
  %v996 = vmin.f32 %v964, 1.0
  %v997 = vmin.f32 %v965, 1.0
  %v998 = vmin.f32 %v966, 1.0
  %v999 = vmin.f32 %v967, 1.0
  %v1000 = vmin.f32 %v968, 1.0
  %v1001 = vmin.f32 %v969, 1.0
  %v1002 = vmin.f32 %v970, 1.0
  %v1003 = vmin.f32 %v971, 1.0
  %v1004 = vmin.f32 %v972, 1.0
  %v1005 = vmin.f32 %v973, 1.0
  %v1006 = vmin.f32 %v974, 1.0
  %v1007 = vmin.f32 %v975, 1.0
  %v1008 = vmin.f32 %v976, 1.0
  %1009 = vmatpush.msra.mxu0 %v992
  %1010 = vmatpush.msra.mxu0 %v991
  %1011 = vmatpush.msra.mxu0 %v990
  %1012 = vmatpush.msra.mxu0 %v989
  %1013 = vmatpush.msra.mxu0 %v988
  %1014 = vmatpush.msra.mxu0 %v987
  %1015 = vmatpush.msra.mxu0 %v986
  %1016 = vmatpush.msra.mxu0 %v985
  %1017 = vmatpush.msra.mxu0 %v984
  %1018 = vmatpush.msra.mxu0 %v983
  %1019 = vmatpush.msra.mxu0 %v982
  %1020 = vmatpush.msra.mxu0 %v981
  %1021 = vmatpush.msra.mxu0 %v980
  %1022 = vmatpush.msra.mxu0 %v979
  %1023 = vmatpush.msra.mxu0 %v978
  %1024 = vmatpush.msra.mxu0 %v977
  %1025 = vmatmul.f32.gmra.mxu0 %v11
  %v1026 = vpop.f32.mrf.mxu0
  %v1027 = vadd.f32 %v107, %v1026
  %1028 = vmatmul.f32.gmra.mxu0 %v13
  %v1029 = vpop.f32.mrf.mxu0
  %v1030 = vadd.f32 %v108, %v1029
  %1031 = vmatmul.f32.gmra.mxu0 %v15
  %v1032 = vpop.f32.mrf.mxu0
  %v1033 = vadd.f32 %v109, %v1032
  %1034 = vmatmul.f32.gmra.mxu0 %v17
  %v1035 = vpop.f32.mrf.mxu0
  %v1036 = vadd.f32 %v110, %v1035
  %1037 = vmatmul.f32.gmra.mxu0 %v19
  %v1038 = vpop.f32.mrf.mxu0
  %v1039 = vadd.f32 %v111, %v1038
  %1040 = vmatmul.f32.gmra.mxu0 %v21
  %v1041 = vpop.f32.mrf.mxu0
  %v1042 = vadd.f32 %v112, %v1041
  %1043 = vmatmul.f32.gmra.mxu0 %v23
  %v1044 = vpop.f32.mrf.mxu0
  %v1045 = vadd.f32 %v113, %v1044
  %1046 = vmatmul.f32.gmra.mxu0 %v25
  %v1047 = vpop.f32.mrf.mxu0
  %v1048 = vadd.f32 %v114, %v1047
  %1049 = vmatmul.f32.gmra.mxu0 %v27
  %v1050 = vpop.f32.mrf.mxu0
  %v1051 = vadd.f32 %v115, %v1050
  %1052 = vmatmul.f32.gmra.mxu0 %v29
  %v1053 = vpop.f32.mrf.mxu0
  %v1054 = vadd.f32 %v116, %v1053
  %1055 = vmatmul.f32.gmra.mxu0 %v31
  %v1056 = vpop.f32.mrf.mxu0
  %v1057 = vadd.f32 %v117, %v1056
  %1058 = vmatmul.f32.gmra.mxu0 %v33
  %v1059 = vpop.f32.mrf.mxu0
  %v1060 = vadd.f32 %v118, %v1059
  %1061 = vmatmul.f32.gmra.mxu0 %v35
  %v1062 = vpop.f32.mrf.mxu0
  %v1063 = vadd.f32 %v119, %v1062
  %1064 = vmatmul.f32.gmra.mxu0 %v37
  %v1065 = vpop.f32.mrf.mxu0
  %v1066 = vadd.f32 %v120, %v1065
  %1067 = vmatmul.f32.gmra.mxu0 %v39
  %v1068 = vpop.f32.mrf.mxu0
  %v1069 = vadd.f32 %v121, %v1068
  %1070 = vmatmul.f32.gmra.mxu0 %v41
  %v1071 = vpop.f32.mrf.mxu0
  %v1072 = vadd.f32 %v122, %v1071
  %1073 = vmatmul.f32.gmra.mxu0 %v43
  %v1074 = vpop.f32.mrf.mxu0
  %v1075 = vadd.f32 %v123, %v1074
  %1076 = vmatmul.f32.gmra.mxu0 %v45
  %v1077 = vpop.f32.mrf.mxu0
  %v1078 = vadd.f32 %v124, %v1077
  %1079 = vmatmul.f32.gmra.mxu0 %v47
  %v1080 = vpop.f32.mrf.mxu0
  %v1081 = vadd.f32 %v125, %v1080
  %1082 = vmatmul.f32.gmra.mxu0 %v49
  %v1083 = vpop.f32.mrf.mxu0
  %v1084 = vadd.f32 %v126, %v1083
  %1085 = vmatmul.f32.gmra.mxu0 %v51
  %v1086 = vpop.f32.mrf.mxu0
  %v1087 = vadd.f32 %v127, %v1086
  %1088 = vmatmul.f32.gmra.mxu0 %v53
  %v1089 = vpop.f32.mrf.mxu0
  %v1090 = vadd.f32 %v128, %v1089
  %1091 = vmatmul.f32.gmra.mxu0 %v55
  %v1092 = vpop.f32.mrf.mxu0
  %v1093 = vadd.f32 %v129, %v1092
  %1094 = vmatmul.f32.gmra.mxu0 %v57
  %v1095 = vpop.f32.mrf.mxu0
  %v1096 = vadd.f32 %v130, %v1095
  %1097 = vmatmul.f32.gmra.mxu0 %v59
  %v1098 = vpop.f32.mrf.mxu0
  %v1099 = vadd.f32 %v131, %v1098
  %1100 = vmatmul.f32.gmra.mxu0 %v61
  %v1101 = vpop.f32.mrf.mxu0
  %v1102 = vadd.f32 %v132, %v1101
  %1103 = vmatmul.f32.gmra.mxu0 %v63
  %v1104 = vpop.f32.mrf.mxu0
  %v1105 = vadd.f32 %v133, %v1104
  %1106 = vmatmul.f32.gmra.mxu0 %v65
  %v1107 = vpop.f32.mrf.mxu0
  %v1108 = vadd.f32 %v134, %v1107
  %1109 = vmatmul.f32.gmra.mxu0 %v67
  %v1110 = vpop.f32.mrf.mxu0
  %v1111 = vadd.f32 %v135, %v1110
  %1112 = vmatmul.f32.gmra.mxu0 %v69
  %v1113 = vpop.f32.mrf.mxu0
  %v1114 = vadd.f32 %v136, %v1113
  %1115 = vmatmul.f32.gmra.mxu0 %v71
  %v1116 = vpop.f32.mrf.mxu0
  %v1117 = vadd.f32 %v137, %v1116
  %1118 = vmatmul.f32.gmra.mxu0 %v73
  %v1119 = vpop.f32.mrf.mxu0
  %v1120 = vadd.f32 %v138, %v1119
  %1121 = vdwg.mxu0
  %1122 = vmatpush.msra.mxu0 %v1008
  %1123 = vmatpush.msra.mxu0 %v1007
  %1124 = vmatpush.msra.mxu0 %v1006
  %1125 = vmatpush.msra.mxu0 %v1005
  %1126 = vmatpush.msra.mxu0 %v1004
  %1127 = vmatpush.msra.mxu0 %v1003
  %1128 = vmatpush.msra.mxu0 %v1002
  %1129 = vmatpush.msra.mxu0 %v1001
  %1130 = vmatpush.msra.mxu0 %v1000
  %1131 = vmatpush.msra.mxu0 %v999
  %1132 = vmatpush.msra.mxu0 %v998
  %1133 = vmatpush.msra.mxu0 %v997
  %1134 = vmatpush.msra.mxu0 %v996
  %1135 = vmatpush.msra.mxu0 %v995
  %1136 = vmatpush.msra.mxu0 %v994
  %1137 = vmatpush.msra.mxu0 %v993
  %1138 = vmatmul.f32.gmra.mxu0 %v12
  %v1139 = vpop.f32.mrf.mxu0
  %v1140 = vadd.f32 %v1027, %v1139
  %1141 = vmatmul.f32.gmra.mxu0 %v14
  %v1142 = vpop.f32.mrf.mxu0
  %v1143 = vadd.f32 %v1030, %v1142
  %1144 = vmatmul.f32.gmra.mxu0 %v16
  %v1145 = vpop.f32.mrf.mxu0
  %v1146 = vadd.f32 %v1033, %v1145
  %1147 = vmatmul.f32.gmra.mxu0 %v18
  %v1148 = vpop.f32.mrf.mxu0
  %v1149 = vadd.f32 %v1036, %v1148
  %1150 = vmatmul.f32.gmra.mxu0 %v20
  %v1151 = vpop.f32.mrf.mxu0
  %v1152 = vadd.f32 %v1039, %v1151
  %1153 = vmatmul.f32.gmra.mxu0 %v22
  %v1154 = vpop.f32.mrf.mxu0
  %v1155 = vadd.f32 %v1042, %v1154
  %1156 = vmatmul.f32.gmra.mxu0 %v24
  %v1157 = vpop.f32.mrf.mxu0
  %v1158 = vadd.f32 %v1045, %v1157
  %1159 = vmatmul.f32.gmra.mxu0 %v26
  %v1160 = vpop.f32.mrf.mxu0
  %v1161 = vadd.f32 %v1048, %v1160
  %1162 = vmatmul.f32.gmra.mxu0 %v28
  %v1163 = vpop.f32.mrf.mxu0
  %v1164 = vadd.f32 %v1051, %v1163
  %1165 = vmatmul.f32.gmra.mxu0 %v30
  %v1166 = vpop.f32.mrf.mxu0
  %v1167 = vadd.f32 %v1054, %v1166
  %1168 = vmatmul.f32.gmra.mxu0 %v32
  %v1169 = vpop.f32.mrf.mxu0
  %v1170 = vadd.f32 %v1057, %v1169
  %1171 = vmatmul.f32.gmra.mxu0 %v34
  %v1172 = vpop.f32.mrf.mxu0
  %v1173 = vadd.f32 %v1060, %v1172
  %1174 = vmatmul.f32.gmra.mxu0 %v36
  %v1175 = vpop.f32.mrf.mxu0
  %v1176 = vadd.f32 %v1063, %v1175
  %1177 = vmatmul.f32.gmra.mxu0 %v38
  %v1178 = vpop.f32.mrf.mxu0
  %v1179 = vadd.f32 %v1066, %v1178
  %1180 = vmatmul.f32.gmra.mxu0 %v40
  %v1181 = vpop.f32.mrf.mxu0
  %v1182 = vadd.f32 %v1069, %v1181
  %1183 = vmatmul.f32.gmra.mxu0 %v42
  %v1184 = vpop.f32.mrf.mxu0
  %v1185 = vadd.f32 %v1072, %v1184
  %1186 = vmatmul.f32.gmra.mxu0 %v44
  %v1187 = vpop.f32.mrf.mxu0
  %v1188 = vadd.f32 %v1075, %v1187
  %1189 = vmatmul.f32.gmra.mxu0 %v46
  %v1190 = vpop.f32.mrf.mxu0
  %v1191 = vadd.f32 %v1078, %v1190
  %1192 = vmatmul.f32.gmra.mxu0 %v48
  %v1193 = vpop.f32.mrf.mxu0
  %v1194 = vadd.f32 %v1081, %v1193
  %1195 = vmatmul.f32.gmra.mxu0 %v50
  %v1196 = vpop.f32.mrf.mxu0
  %v1197 = vadd.f32 %v1084, %v1196
  %1198 = vmatmul.f32.gmra.mxu0 %v52
  %v1199 = vpop.f32.mrf.mxu0
  %v1200 = vadd.f32 %v1087, %v1199
  %1201 = vmatmul.f32.gmra.mxu0 %v54
  %v1202 = vpop.f32.mrf.mxu0
  %v1203 = vadd.f32 %v1090, %v1202
  %1204 = vmatmul.f32.gmra.mxu0 %v56
  %v1205 = vpop.f32.mrf.mxu0
  %v1206 = vadd.f32 %v1093, %v1205
  %1207 = vmatmul.f32.gmra.mxu0 %v58
  %v1208 = vpop.f32.mrf.mxu0
  %v1209 = vadd.f32 %v1096, %v1208
  %1210 = vmatmul.f32.gmra.mxu0 %v60
  %v1211 = vpop.f32.mrf.mxu0
  %v1212 = vadd.f32 %v1099, %v1211
  %1213 = vmatmul.f32.gmra.mxu0 %v62
  %v1214 = vpop.f32.mrf.mxu0
  %v1215 = vadd.f32 %v1102, %v1214
  %1216 = vmatmul.f32.gmra.mxu0 %v64
  %v1217 = vpop.f32.mrf.mxu0
  %v1218 = vadd.f32 %v1105, %v1217
  %1219 = vmatmul.f32.gmra.mxu0 %v66
  %v1220 = vpop.f32.mrf.mxu0
  %v1221 = vadd.f32 %v1108, %v1220
  %1222 = vmatmul.f32.gmra.mxu0 %v68
  %v1223 = vpop.f32.mrf.mxu0
  %v1224 = vadd.f32 %v1111, %v1223
  %1225 = vmatmul.f32.gmra.mxu0 %v70
  %v1226 = vpop.f32.mrf.mxu0
  %v1227 = vadd.f32 %v1114, %v1226
  %1228 = vmatmul.f32.gmra.mxu0 %v72
  %v1229 = vpop.f32.mrf.mxu0
  %v1230 = vadd.f32 %v1117, %v1229
  %1231 = vmatmul.f32.gmra.mxu0 %v74
  %v1232 = vpop.f32.mrf.mxu0
  %v1233 = vadd.f32 %v1120, %v1232
  %1234 = vdwg.mxu0
  %v1235 = vmax.f32 %v1140, 0.0
  %v1236 = vmax.f32 %v1143, 0.0
  %v1237 = vmax.f32 %v1146, 0.0
  %v1238 = vmax.f32 %v1149, 0.0
  %v1239 = vmax.f32 %v1152, 0.0
  %v1240 = vmax.f32 %v1155, 0.0
  %v1241 = vmax.f32 %v1158, 0.0
  %v1242 = vmax.f32 %v1161, 0.0
  %v1243 = vmax.f32 %v1164, 0.0
  %v1244 = vmax.f32 %v1167, 0.0
  %v1245 = vmax.f32 %v1170, 0.0
  %v1246 = vmax.f32 %v1173, 0.0
  %v1247 = vmax.f32 %v1176, 0.0
  %v1248 = vmax.f32 %v1179, 0.0
  %v1249 = vmax.f32 %v1182, 0.0
  %v1250 = vmax.f32 %v1185, 0.0
  %v1251 = vmax.f32 %v1188, 0.0
  %v1252 = vmax.f32 %v1191, 0.0
  %v1253 = vmax.f32 %v1194, 0.0
  %v1254 = vmax.f32 %v1197, 0.0
  %v1255 = vmax.f32 %v1200, 0.0
  %v1256 = vmax.f32 %v1203, 0.0
  %v1257 = vmax.f32 %v1206, 0.0
  %v1258 = vmax.f32 %v1209, 0.0
  %v1259 = vmax.f32 %v1212, 0.0
  %v1260 = vmax.f32 %v1215, 0.0
  %v1261 = vmax.f32 %v1218, 0.0
  %v1262 = vmax.f32 %v1221, 0.0
  %v1263 = vmax.f32 %v1224, 0.0
  %v1264 = vmax.f32 %v1227, 0.0
  %v1265 = vmax.f32 %v1230, 0.0
  %v1266 = vmax.f32 %v1233, 0.0
  %v1267 = vmin.f32 %v1235, 1.0
  %v1268 = vmin.f32 %v1236, 1.0
  %v1269 = vmin.f32 %v1237, 1.0
  %v1270 = vmin.f32 %v1238, 1.0
  %v1271 = vmin.f32 %v1239, 1.0
  %v1272 = vmin.f32 %v1240, 1.0
  %v1273 = vmin.f32 %v1241, 1.0
  %v1274 = vmin.f32 %v1242, 1.0
  %v1275 = vmin.f32 %v1243, 1.0
  %v1276 = vmin.f32 %v1244, 1.0
  %v1277 = vmin.f32 %v1245, 1.0
  %v1278 = vmin.f32 %v1246, 1.0
  %v1279 = vmin.f32 %v1247, 1.0
  %v1280 = vmin.f32 %v1248, 1.0
  %v1281 = vmin.f32 %v1249, 1.0
  %v1282 = vmin.f32 %v1250, 1.0
  %v1283 = vmin.f32 %v1251, 1.0
  %v1284 = vmin.f32 %v1252, 1.0
  %v1285 = vmin.f32 %v1253, 1.0
  %v1286 = vmin.f32 %v1254, 1.0
  %v1287 = vmin.f32 %v1255, 1.0
  %v1288 = vmin.f32 %v1256, 1.0
  %v1289 = vmin.f32 %v1257, 1.0
  %v1290 = vmin.f32 %v1258, 1.0
  %v1291 = vmin.f32 %v1259, 1.0
  %v1292 = vmin.f32 %v1260, 1.0
  %v1293 = vmin.f32 %v1261, 1.0
  %v1294 = vmin.f32 %v1262, 1.0
  %v1295 = vmin.f32 %v1263, 1.0
  %v1296 = vmin.f32 %v1264, 1.0
  %v1297 = vmin.f32 %v1265, 1.0
  %v1298 = vmin.f32 %v1266, 1.0
  %1299 = vmatpush.msra.mxu0 %v1282
  %1300 = vmatpush.msra.mxu0 %v1281
  %1301 = vmatpush.msra.mxu0 %v1280
  %1302 = vmatpush.msra.mxu0 %v1279
  %1303 = vmatpush.msra.mxu0 %v1278
  %1304 = vmatpush.msra.mxu0 %v1277
  %1305 = vmatpush.msra.mxu0 %v1276
  %1306 = vmatpush.msra.mxu0 %v1275
  %1307 = vmatpush.msra.mxu0 %v1274
  %1308 = vmatpush.msra.mxu0 %v1273
  %1309 = vmatpush.msra.mxu0 %v1272
  %1310 = vmatpush.msra.mxu0 %v1271
  %1311 = vmatpush.msra.mxu0 %v1270
  %1312 = vmatpush.msra.mxu0 %v1269
  %1313 = vmatpush.msra.mxu0 %v1268
  %1314 = vmatpush.msra.mxu0 %v1267
  %1315 = vmatmul.f32.gmra.mxu0 %v11
  %v1316 = vpop.f32.mrf.mxu0
  %v1317 = vadd.f32 %v107, %v1316
  %1318 = vmatmul.f32.gmra.mxu0 %v13
  %v1319 = vpop.f32.mrf.mxu0
  %v1320 = vadd.f32 %v108, %v1319
  %1321 = vmatmul.f32.gmra.mxu0 %v15
  %v1322 = vpop.f32.mrf.mxu0
  %v1323 = vadd.f32 %v109, %v1322
  %1324 = vmatmul.f32.gmra.mxu0 %v17
  %v1325 = vpop.f32.mrf.mxu0
  %v1326 = vadd.f32 %v110, %v1325
  %1327 = vmatmul.f32.gmra.mxu0 %v19
  %v1328 = vpop.f32.mrf.mxu0
  %v1329 = vadd.f32 %v111, %v1328
  %1330 = vmatmul.f32.gmra.mxu0 %v21
  %v1331 = vpop.f32.mrf.mxu0
  %v1332 = vadd.f32 %v112, %v1331
  %1333 = vmatmul.f32.gmra.mxu0 %v23
  %v1334 = vpop.f32.mrf.mxu0
  %v1335 = vadd.f32 %v113, %v1334
  %1336 = vmatmul.f32.gmra.mxu0 %v25
  %v1337 = vpop.f32.mrf.mxu0
  %v1338 = vadd.f32 %v114, %v1337
  %1339 = vmatmul.f32.gmra.mxu0 %v27
  %v1340 = vpop.f32.mrf.mxu0
  %v1341 = vadd.f32 %v115, %v1340
  %1342 = vmatmul.f32.gmra.mxu0 %v29
  %v1343 = vpop.f32.mrf.mxu0
  %v1344 = vadd.f32 %v116, %v1343
  %1345 = vmatmul.f32.gmra.mxu0 %v31
  %v1346 = vpop.f32.mrf.mxu0
  %v1347 = vadd.f32 %v117, %v1346
  %1348 = vmatmul.f32.gmra.mxu0 %v33
  %v1349 = vpop.f32.mrf.mxu0
  %v1350 = vadd.f32 %v118, %v1349
  %1351 = vmatmul.f32.gmra.mxu0 %v35
  %v1352 = vpop.f32.mrf.mxu0
  %v1353 = vadd.f32 %v119, %v1352
  %1354 = vmatmul.f32.gmra.mxu0 %v37
  %v1355 = vpop.f32.mrf.mxu0
  %v1356 = vadd.f32 %v120, %v1355
  %1357 = vmatmul.f32.gmra.mxu0 %v39
  %v1358 = vpop.f32.mrf.mxu0
  %v1359 = vadd.f32 %v121, %v1358
  %1360 = vmatmul.f32.gmra.mxu0 %v41
  %v1361 = vpop.f32.mrf.mxu0
  %v1362 = vadd.f32 %v122, %v1361
  %1363 = vmatmul.f32.gmra.mxu0 %v43
  %v1364 = vpop.f32.mrf.mxu0
  %v1365 = vadd.f32 %v123, %v1364
  %1366 = vmatmul.f32.gmra.mxu0 %v45
  %v1367 = vpop.f32.mrf.mxu0
  %v1368 = vadd.f32 %v124, %v1367
  %1369 = vmatmul.f32.gmra.mxu0 %v47
  %v1370 = vpop.f32.mrf.mxu0
  %v1371 = vadd.f32 %v125, %v1370
  %1372 = vmatmul.f32.gmra.mxu0 %v49
  %v1373 = vpop.f32.mrf.mxu0
  %v1374 = vadd.f32 %v126, %v1373
  %1375 = vmatmul.f32.gmra.mxu0 %v51
  %v1376 = vpop.f32.mrf.mxu0
  %v1377 = vadd.f32 %v127, %v1376
  %1378 = vmatmul.f32.gmra.mxu0 %v53
  %v1379 = vpop.f32.mrf.mxu0
  %v1380 = vadd.f32 %v128, %v1379
  %1381 = vmatmul.f32.gmra.mxu0 %v55
  %v1382 = vpop.f32.mrf.mxu0
  %v1383 = vadd.f32 %v129, %v1382
  %1384 = vmatmul.f32.gmra.mxu0 %v57
  %v1385 = vpop.f32.mrf.mxu0
  %v1386 = vadd.f32 %v130, %v1385
  %1387 = vmatmul.f32.gmra.mxu0 %v59
  %v1388 = vpop.f32.mrf.mxu0
  %v1389 = vadd.f32 %v131, %v1388
  %1390 = vmatmul.f32.gmra.mxu0 %v61
  %v1391 = vpop.f32.mrf.mxu0
  %v1392 = vadd.f32 %v132, %v1391
  %1393 = vmatmul.f32.gmra.mxu0 %v63
  %v1394 = vpop.f32.mrf.mxu0
  %v1395 = vadd.f32 %v133, %v1394
  %1396 = vmatmul.f32.gmra.mxu0 %v65
  %v1397 = vpop.f32.mrf.mxu0
  %v1398 = vadd.f32 %v134, %v1397
  %1399 = vmatmul.f32.gmra.mxu0 %v67
  %v1400 = vpop.f32.mrf.mxu0
  %v1401 = vadd.f32 %v135, %v1400
  %1402 = vmatmul.f32.gmra.mxu0 %v69
  %v1403 = vpop.f32.mrf.mxu0
  %v1404 = vadd.f32 %v136, %v1403
  %1405 = vmatmul.f32.gmra.mxu0 %v71
  %v1406 = vpop.f32.mrf.mxu0
  %v1407 = vadd.f32 %v137, %v1406
  %1408 = vmatmul.f32.gmra.mxu0 %v73
  %v1409 = vpop.f32.mrf.mxu0
  %v1410 = vadd.f32 %v138, %v1409
  %1411 = vdwg.mxu0
  %1412 = vmatpush.msra.mxu0 %v1298
  %1413 = vmatpush.msra.mxu0 %v1297
  %1414 = vmatpush.msra.mxu0 %v1296
  %1415 = vmatpush.msra.mxu0 %v1295
  %1416 = vmatpush.msra.mxu0 %v1294
  %1417 = vmatpush.msra.mxu0 %v1293
  %1418 = vmatpush.msra.mxu0 %v1292
  %1419 = vmatpush.msra.mxu0 %v1291
  %1420 = vmatpush.msra.mxu0 %v1290
  %1421 = vmatpush.msra.mxu0 %v1289
  %1422 = vmatpush.msra.mxu0 %v1288
  %1423 = vmatpush.msra.mxu0 %v1287
  %1424 = vmatpush.msra.mxu0 %v1286
  %1425 = vmatpush.msra.mxu0 %v1285
  %1426 = vmatpush.msra.mxu0 %v1284
  %1427 = vmatpush.msra.mxu0 %v1283
  %1428 = vmatmul.f32.gmra.mxu0 %v12
  %v1429 = vpop.f32.mrf.mxu0
  %v1430 = vadd.f32 %v1317, %v1429
  %1431 = vmatmul.f32.gmra.mxu0 %v14
  %v1432 = vpop.f32.mrf.mxu0
  %v1433 = vadd.f32 %v1320, %v1432
  %1434 = vmatmul.f32.gmra.mxu0 %v16
  %v1435 = vpop.f32.mrf.mxu0
  %v1436 = vadd.f32 %v1323, %v1435
  %1437 = vmatmul.f32.gmra.mxu0 %v18
  %v1438 = vpop.f32.mrf.mxu0
  %v1439 = vadd.f32 %v1326, %v1438
  %1440 = vmatmul.f32.gmra.mxu0 %v20
  %v1441 = vpop.f32.mrf.mxu0
  %v1442 = vadd.f32 %v1329, %v1441
  %1443 = vmatmul.f32.gmra.mxu0 %v22
  %v1444 = vpop.f32.mrf.mxu0
  %v1445 = vadd.f32 %v1332, %v1444
  %1446 = vmatmul.f32.gmra.mxu0 %v24
  %v1447 = vpop.f32.mrf.mxu0
  %v1448 = vadd.f32 %v1335, %v1447
  %1449 = vmatmul.f32.gmra.mxu0 %v26
  %v1450 = vpop.f32.mrf.mxu0
  %v1451 = vadd.f32 %v1338, %v1450
  %1452 = vmatmul.f32.gmra.mxu0 %v28
  %v1453 = vpop.f32.mrf.mxu0
  %v1454 = vadd.f32 %v1341, %v1453
  %1455 = vmatmul.f32.gmra.mxu0 %v30
  %v1456 = vpop.f32.mrf.mxu0
  %v1457 = vadd.f32 %v1344, %v1456
  %1458 = vmatmul.f32.gmra.mxu0 %v32
  %v1459 = vpop.f32.mrf.mxu0
  %v1460 = vadd.f32 %v1347, %v1459
  %1461 = vmatmul.f32.gmra.mxu0 %v34
  %v1462 = vpop.f32.mrf.mxu0
  %v1463 = vadd.f32 %v1350, %v1462
  %1464 = vmatmul.f32.gmra.mxu0 %v36
  %v1465 = vpop.f32.mrf.mxu0
  %v1466 = vadd.f32 %v1353, %v1465
  %1467 = vmatmul.f32.gmra.mxu0 %v38
  %v1468 = vpop.f32.mrf.mxu0
  %v1469 = vadd.f32 %v1356, %v1468
  %1470 = vmatmul.f32.gmra.mxu0 %v40
  %v1471 = vpop.f32.mrf.mxu0
  %v1472 = vadd.f32 %v1359, %v1471
  %1473 = vmatmul.f32.gmra.mxu0 %v42
  %v1474 = vpop.f32.mrf.mxu0
  %v1475 = vadd.f32 %v1362, %v1474
  %1476 = vmatmul.f32.gmra.mxu0 %v44
  %v1477 = vpop.f32.mrf.mxu0
  %v1478 = vadd.f32 %v1365, %v1477
  %1479 = vmatmul.f32.gmra.mxu0 %v46
  %v1480 = vpop.f32.mrf.mxu0
  %v1481 = vadd.f32 %v1368, %v1480
  %1482 = vmatmul.f32.gmra.mxu0 %v48
  %v1483 = vpop.f32.mrf.mxu0
  %v1484 = vadd.f32 %v1371, %v1483
  %1485 = vmatmul.f32.gmra.mxu0 %v50
  %v1486 = vpop.f32.mrf.mxu0
  %v1487 = vadd.f32 %v1374, %v1486
  %1488 = vmatmul.f32.gmra.mxu0 %v52
  %v1489 = vpop.f32.mrf.mxu0
  %v1490 = vadd.f32 %v1377, %v1489
  %1491 = vmatmul.f32.gmra.mxu0 %v54
  %v1492 = vpop.f32.mrf.mxu0
  %v1493 = vadd.f32 %v1380, %v1492
  %1494 = vmatmul.f32.gmra.mxu0 %v56
  %v1495 = vpop.f32.mrf.mxu0
  %v1496 = vadd.f32 %v1383, %v1495
  %1497 = vmatmul.f32.gmra.mxu0 %v58
  %v1498 = vpop.f32.mrf.mxu0
  %v1499 = vadd.f32 %v1386, %v1498
  %1500 = vmatmul.f32.gmra.mxu0 %v60
  %v1501 = vpop.f32.mrf.mxu0
  %v1502 = vadd.f32 %v1389, %v1501
  %1503 = vmatmul.f32.gmra.mxu0 %v62
  %v1504 = vpop.f32.mrf.mxu0
  %v1505 = vadd.f32 %v1392, %v1504
  %1506 = vmatmul.f32.gmra.mxu0 %v64
  %v1507 = vpop.f32.mrf.mxu0
  %v1508 = vadd.f32 %v1395, %v1507
  %1509 = vmatmul.f32.gmra.mxu0 %v66
  %v1510 = vpop.f32.mrf.mxu0
  %v1511 = vadd.f32 %v1398, %v1510
  %1512 = vmatmul.f32.gmra.mxu0 %v68
  %v1513 = vpop.f32.mrf.mxu0
  %v1514 = vadd.f32 %v1401, %v1513
  %1515 = vmatmul.f32.gmra.mxu0 %v70
  %v1516 = vpop.f32.mrf.mxu0
  %v1517 = vadd.f32 %v1404, %v1516
  %1518 = vmatmul.f32.gmra.mxu0 %v72
  %v1519 = vpop.f32.mrf.mxu0
  %v1520 = vadd.f32 %v1407, %v1519
  %1521 = vmatmul.f32.gmra.mxu0 %v74
  %v1522 = vpop.f32.mrf.mxu0
  %v1523 = vadd.f32 %v1410, %v1522
  %1524 = vdwg.mxu0
  %v1525 = vmax.f32 %v1430, 0.0
  %v1526 = vmax.f32 %v1433, 0.0
  %v1527 = vmax.f32 %v1436, 0.0
  %v1528 = vmax.f32 %v1439, 0.0
  %v1529 = vmax.f32 %v1442, 0.0
  %v1530 = vmax.f32 %v1445, 0.0
  %v1531 = vmax.f32 %v1448, 0.0
  %v1532 = vmax.f32 %v1451, 0.0
  %v1533 = vmax.f32 %v1454, 0.0
  %v1534 = vmax.f32 %v1457, 0.0
  %v1535 = vmax.f32 %v1460, 0.0
  %v1536 = vmax.f32 %v1463, 0.0
  %v1537 = vmax.f32 %v1466, 0.0
  %v1538 = vmax.f32 %v1469, 0.0
  %v1539 = vmax.f32 %v1472, 0.0
  %v1540 = vmax.f32 %v1475, 0.0
  %v1541 = vmax.f32 %v1478, 0.0
  %v1542 = vmax.f32 %v1481, 0.0
  %v1543 = vmax.f32 %v1484, 0.0
  %v1544 = vmax.f32 %v1487, 0.0
  %v1545 = vmax.f32 %v1490, 0.0
  %v1546 = vmax.f32 %v1493, 0.0
  %v1547 = vmax.f32 %v1496, 0.0
  %v1548 = vmax.f32 %v1499, 0.0
  %v1549 = vmax.f32 %v1502, 0.0
  %v1550 = vmax.f32 %v1505, 0.0
  %v1551 = vmax.f32 %v1508, 0.0
  %v1552 = vmax.f32 %v1511, 0.0
  %v1553 = vmax.f32 %v1514, 0.0
  %v1554 = vmax.f32 %v1517, 0.0
  %v1555 = vmax.f32 %v1520, 0.0
  %v1556 = vmax.f32 %v1523, 0.0
  %v1557 = vmin.f32 %v1525, 1.0
  %v1558 = vmin.f32 %v1526, 1.0
  %v1559 = vmin.f32 %v1527, 1.0
  %v1560 = vmin.f32 %v1528, 1.0
  %v1561 = vmin.f32 %v1529, 1.0
  %v1562 = vmin.f32 %v1530, 1.0
  %v1563 = vmin.f32 %v1531, 1.0
  %v1564 = vmin.f32 %v1532, 1.0
  %v1565 = vmin.f32 %v1533, 1.0
  %v1566 = vmin.f32 %v1534, 1.0
  %v1567 = vmin.f32 %v1535, 1.0
  %v1568 = vmin.f32 %v1536, 1.0
  %v1569 = vmin.f32 %v1537, 1.0
  %v1570 = vmin.f32 %v1538, 1.0
  %v1571 = vmin.f32 %v1539, 1.0
  %v1572 = vmin.f32 %v1540, 1.0
  %v1573 = vmin.f32 %v1541, 1.0
  %v1574 = vmin.f32 %v1542, 1.0
  %v1575 = vmin.f32 %v1543, 1.0
  %v1576 = vmin.f32 %v1544, 1.0
  %v1577 = vmin.f32 %v1545, 1.0
  %v1578 = vmin.f32 %v1546, 1.0
  %v1579 = vmin.f32 %v1547, 1.0
  %v1580 = vmin.f32 %v1548, 1.0
  %v1581 = vmin.f32 %v1549, 1.0
  %v1582 = vmin.f32 %v1550, 1.0
  %v1583 = vmin.f32 %v1551, 1.0
  %v1584 = vmin.f32 %v1552, 1.0
  %v1585 = vmin.f32 %v1553, 1.0
  %v1586 = vmin.f32 %v1554, 1.0
  %v1587 = vmin.f32 %v1555, 1.0
  %v1588 = vmin.f32 %v1556, 1.0
  %1589 = vmatpush.msra.mxu0 %v1572
  %1590 = vmatpush.msra.mxu0 %v1571
  %1591 = vmatpush.msra.mxu0 %v1570
  %1592 = vmatpush.msra.mxu0 %v1569
  %1593 = vmatpush.msra.mxu0 %v1568
  %1594 = vmatpush.msra.mxu0 %v1567
  %1595 = vmatpush.msra.mxu0 %v1566
  %1596 = vmatpush.msra.mxu0 %v1565
  %1597 = vmatpush.msra.mxu0 %v1564
  %1598 = vmatpush.msra.mxu0 %v1563
  %1599 = vmatpush.msra.mxu0 %v1562
  %1600 = vmatpush.msra.mxu0 %v1561
  %1601 = vmatpush.msra.mxu0 %v1560
  %1602 = vmatpush.msra.mxu0 %v1559
  %1603 = vmatpush.msra.mxu0 %v1558
  %1604 = vmatpush.msra.mxu0 %v1557
  %1605 = vmatmul.f32.gmra.mxu0 %v11
  %v1606 = vpop.f32.mrf.mxu0
  %v1607 = vadd.f32 %v107, %v1606
  %1608 = vmatmul.f32.gmra.mxu0 %v13
  %v1609 = vpop.f32.mrf.mxu0
  %v1610 = vadd.f32 %v108, %v1609
  %1611 = vmatmul.f32.gmra.mxu0 %v15
  %v1612 = vpop.f32.mrf.mxu0
  %v1613 = vadd.f32 %v109, %v1612
  %1614 = vmatmul.f32.gmra.mxu0 %v17
  %v1615 = vpop.f32.mrf.mxu0
  %v1616 = vadd.f32 %v110, %v1615
  %1617 = vmatmul.f32.gmra.mxu0 %v19
  %v1618 = vpop.f32.mrf.mxu0
  %v1619 = vadd.f32 %v111, %v1618
  %1620 = vmatmul.f32.gmra.mxu0 %v21
  %v1621 = vpop.f32.mrf.mxu0
  %v1622 = vadd.f32 %v112, %v1621
  %1623 = vmatmul.f32.gmra.mxu0 %v23
  %v1624 = vpop.f32.mrf.mxu0
  %v1625 = vadd.f32 %v113, %v1624
  %1626 = vmatmul.f32.gmra.mxu0 %v25
  %v1627 = vpop.f32.mrf.mxu0
  %v1628 = vadd.f32 %v114, %v1627
  %1629 = vmatmul.f32.gmra.mxu0 %v27
  %v1630 = vpop.f32.mrf.mxu0
  %v1631 = vadd.f32 %v115, %v1630
  %1632 = vmatmul.f32.gmra.mxu0 %v29
  %v1633 = vpop.f32.mrf.mxu0
  %v1634 = vadd.f32 %v116, %v1633
  %1635 = vmatmul.f32.gmra.mxu0 %v31
  %v1636 = vpop.f32.mrf.mxu0
  %v1637 = vadd.f32 %v117, %v1636
  %1638 = vmatmul.f32.gmra.mxu0 %v33
  %v1639 = vpop.f32.mrf.mxu0
  %v1640 = vadd.f32 %v118, %v1639
  %1641 = vmatmul.f32.gmra.mxu0 %v35
  %v1642 = vpop.f32.mrf.mxu0
  %v1643 = vadd.f32 %v119, %v1642
  %1644 = vmatmul.f32.gmra.mxu0 %v37
  %v1645 = vpop.f32.mrf.mxu0
  %v1646 = vadd.f32 %v120, %v1645
  %1647 = vmatmul.f32.gmra.mxu0 %v39
  %v1648 = vpop.f32.mrf.mxu0
  %v1649 = vadd.f32 %v121, %v1648
  %1650 = vmatmul.f32.gmra.mxu0 %v41
  %v1651 = vpop.f32.mrf.mxu0
  %v1652 = vadd.f32 %v122, %v1651
  %1653 = vmatmul.f32.gmra.mxu0 %v43
  %v1654 = vpop.f32.mrf.mxu0
  %v1655 = vadd.f32 %v123, %v1654
  %1656 = vmatmul.f32.gmra.mxu0 %v45
  %v1657 = vpop.f32.mrf.mxu0
  %v1658 = vadd.f32 %v124, %v1657
  %1659 = vmatmul.f32.gmra.mxu0 %v47
  %v1660 = vpop.f32.mrf.mxu0
  %v1661 = vadd.f32 %v125, %v1660
  %1662 = vmatmul.f32.gmra.mxu0 %v49
  %v1663 = vpop.f32.mrf.mxu0
  %v1664 = vadd.f32 %v126, %v1663
  %1665 = vmatmul.f32.gmra.mxu0 %v51
  %v1666 = vpop.f32.mrf.mxu0
  %v1667 = vadd.f32 %v127, %v1666
  %1668 = vmatmul.f32.gmra.mxu0 %v53
  %v1669 = vpop.f32.mrf.mxu0
  %v1670 = vadd.f32 %v128, %v1669
  %1671 = vmatmul.f32.gmra.mxu0 %v55
  %v1672 = vpop.f32.mrf.mxu0
  %v1673 = vadd.f32 %v129, %v1672
  %1674 = vmatmul.f32.gmra.mxu0 %v57
  %v1675 = vpop.f32.mrf.mxu0
  %v1676 = vadd.f32 %v130, %v1675
  %1677 = vmatmul.f32.gmra.mxu0 %v59
  %v1678 = vpop.f32.mrf.mxu0
  %v1679 = vadd.f32 %v131, %v1678
  %1680 = vmatmul.f32.gmra.mxu0 %v61
  %v1681 = vpop.f32.mrf.mxu0
  %v1682 = vadd.f32 %v132, %v1681
  %1683 = vmatmul.f32.gmra.mxu0 %v63
  %v1684 = vpop.f32.mrf.mxu0
  %v1685 = vadd.f32 %v133, %v1684
  %1686 = vmatmul.f32.gmra.mxu0 %v65
  %v1687 = vpop.f32.mrf.mxu0
  %v1688 = vadd.f32 %v134, %v1687
  %1689 = vmatmul.f32.gmra.mxu0 %v67
  %v1690 = vpop.f32.mrf.mxu0
  %v1691 = vadd.f32 %v135, %v1690
  %1692 = vmatmul.f32.gmra.mxu0 %v69
  %v1693 = vpop.f32.mrf.mxu0
  %v1694 = vadd.f32 %v136, %v1693
  %1695 = vmatmul.f32.gmra.mxu0 %v71
  %v1696 = vpop.f32.mrf.mxu0
  %v1697 = vadd.f32 %v137, %v1696
  %1698 = vmatmul.f32.gmra.mxu0 %v73
  %v1699 = vpop.f32.mrf.mxu0
  %v1700 = vadd.f32 %v138, %v1699
  %1701 = vdwg.mxu0
  %1702 = vmatpush.msra.mxu0 %v1588
  %1703 = vmatpush.msra.mxu0 %v1587
  %1704 = vmatpush.msra.mxu0 %v1586
  %1705 = vmatpush.msra.mxu0 %v1585
  %1706 = vmatpush.msra.mxu0 %v1584
  %1707 = vmatpush.msra.mxu0 %v1583
  %1708 = vmatpush.msra.mxu0 %v1582
  %1709 = vmatpush.msra.mxu0 %v1581
  %1710 = vmatpush.msra.mxu0 %v1580
  %1711 = vmatpush.msra.mxu0 %v1579
  %1712 = vmatpush.msra.mxu0 %v1578
  %1713 = vmatpush.msra.mxu0 %v1577
  %1714 = vmatpush.msra.mxu0 %v1576
  %1715 = vmatpush.msra.mxu0 %v1575
  %1716 = vmatpush.msra.mxu0 %v1574
  %1717 = vmatpush.msra.mxu0 %v1573
  %1718 = vmatmul.f32.gmra.mxu0 %v12
  %v1719 = vpop.f32.mrf.mxu0
  %v1720 = vadd.f32 %v1607, %v1719
  %1721 = vmatmul.f32.gmra.mxu0 %v14
  %v1722 = vpop.f32.mrf.mxu0
  %v1723 = vadd.f32 %v1610, %v1722
  %1724 = vmatmul.f32.gmra.mxu0 %v16
  %v1725 = vpop.f32.mrf.mxu0
  %v1726 = vadd.f32 %v1613, %v1725
  %1727 = vmatmul.f32.gmra.mxu0 %v18
  %v1728 = vpop.f32.mrf.mxu0
  %v1729 = vadd.f32 %v1616, %v1728
  %1730 = vmatmul.f32.gmra.mxu0 %v20
  %v1731 = vpop.f32.mrf.mxu0
  %v1732 = vadd.f32 %v1619, %v1731
  %1733 = vmatmul.f32.gmra.mxu0 %v22
  %v1734 = vpop.f32.mrf.mxu0
  %v1735 = vadd.f32 %v1622, %v1734
  %1736 = vmatmul.f32.gmra.mxu0 %v24
  %v1737 = vpop.f32.mrf.mxu0
  %v1738 = vadd.f32 %v1625, %v1737
  %1739 = vmatmul.f32.gmra.mxu0 %v26
  %v1740 = vpop.f32.mrf.mxu0
  %v1741 = vadd.f32 %v1628, %v1740
  %1742 = vmatmul.f32.gmra.mxu0 %v28
  %v1743 = vpop.f32.mrf.mxu0
  %v1744 = vadd.f32 %v1631, %v1743
  %1745 = vmatmul.f32.gmra.mxu0 %v30
  %v1746 = vpop.f32.mrf.mxu0
  %v1747 = vadd.f32 %v1634, %v1746
  %1748 = vmatmul.f32.gmra.mxu0 %v32
  %v1749 = vpop.f32.mrf.mxu0
  %v1750 = vadd.f32 %v1637, %v1749
  %1751 = vmatmul.f32.gmra.mxu0 %v34
  %v1752 = vpop.f32.mrf.mxu0
  %v1753 = vadd.f32 %v1640, %v1752
  %1754 = vmatmul.f32.gmra.mxu0 %v36
  %v1755 = vpop.f32.mrf.mxu0
  %v1756 = vadd.f32 %v1643, %v1755
  %1757 = vmatmul.f32.gmra.mxu0 %v38
  %v1758 = vpop.f32.mrf.mxu0
  %v1759 = vadd.f32 %v1646, %v1758
  %1760 = vmatmul.f32.gmra.mxu0 %v40
  %v1761 = vpop.f32.mrf.mxu0
  %v1762 = vadd.f32 %v1649, %v1761
  %1763 = vmatmul.f32.gmra.mxu0 %v42
  %v1764 = vpop.f32.mrf.mxu0
  %v1765 = vadd.f32 %v1652, %v1764
  %1766 = vmatmul.f32.gmra.mxu0 %v44
  %v1767 = vpop.f32.mrf.mxu0
  %v1768 = vadd.f32 %v1655, %v1767
  %1769 = vmatmul.f32.gmra.mxu0 %v46
  %v1770 = vpop.f32.mrf.mxu0
  %v1771 = vadd.f32 %v1658, %v1770
  %1772 = vmatmul.f32.gmra.mxu0 %v48
  %v1773 = vpop.f32.mrf.mxu0
  %v1774 = vadd.f32 %v1661, %v1773
  %1775 = vmatmul.f32.gmra.mxu0 %v50
  %v1776 = vpop.f32.mrf.mxu0
  %v1777 = vadd.f32 %v1664, %v1776
  %1778 = vmatmul.f32.gmra.mxu0 %v52
  %v1779 = vpop.f32.mrf.mxu0
  %v1780 = vadd.f32 %v1667, %v1779
  %1781 = vmatmul.f32.gmra.mxu0 %v54
  %v1782 = vpop.f32.mrf.mxu0
  %v1783 = vadd.f32 %v1670, %v1782
  %1784 = vmatmul.f32.gmra.mxu0 %v56
  %v1785 = vpop.f32.mrf.mxu0
  %v1786 = vadd.f32 %v1673, %v1785
  %1787 = vmatmul.f32.gmra.mxu0 %v58
  %v1788 = vpop.f32.mrf.mxu0
  %v1789 = vadd.f32 %v1676, %v1788
  %1790 = vmatmul.f32.gmra.mxu0 %v60
  %v1791 = vpop.f32.mrf.mxu0
  %v1792 = vadd.f32 %v1679, %v1791
  %1793 = vmatmul.f32.gmra.mxu0 %v62
  %v1794 = vpop.f32.mrf.mxu0
  %v1795 = vadd.f32 %v1682, %v1794
  %1796 = vmatmul.f32.gmra.mxu0 %v64
  %v1797 = vpop.f32.mrf.mxu0
  %v1798 = vadd.f32 %v1685, %v1797
  %1799 = vmatmul.f32.gmra.mxu0 %v66
  %v1800 = vpop.f32.mrf.mxu0
  %v1801 = vadd.f32 %v1688, %v1800
  %1802 = vmatmul.f32.gmra.mxu0 %v68
  %v1803 = vpop.f32.mrf.mxu0
  %v1804 = vadd.f32 %v1691, %v1803
  %1805 = vmatmul.f32.gmra.mxu0 %v70
  %v1806 = vpop.f32.mrf.mxu0
  %v1807 = vadd.f32 %v1694, %v1806
  %1808 = vmatmul.f32.gmra.mxu0 %v72
  %v1809 = vpop.f32.mrf.mxu0
  %v1810 = vadd.f32 %v1697, %v1809
  %1811 = vmatmul.f32.gmra.mxu0 %v74
  %v1812 = vpop.f32.mrf.mxu0
  %v1813 = vadd.f32 %v1700, %v1812
  %1814 = vdwg.mxu0
  %v1815 = vmax.f32 %v1720, 0.0
  %v1816 = vmax.f32 %v1723, 0.0
  %v1817 = vmax.f32 %v1726, 0.0
  %v1818 = vmax.f32 %v1729, 0.0
  %v1819 = vmax.f32 %v1732, 0.0
  %v1820 = vmax.f32 %v1735, 0.0
  %v1821 = vmax.f32 %v1738, 0.0
  %v1822 = vmax.f32 %v1741, 0.0
  %v1823 = vmax.f32 %v1744, 0.0
  %v1824 = vmax.f32 %v1747, 0.0
  %v1825 = vmax.f32 %v1750, 0.0
  %v1826 = vmax.f32 %v1753, 0.0
  %v1827 = vmax.f32 %v1756, 0.0
  %v1828 = vmax.f32 %v1759, 0.0
  %v1829 = vmax.f32 %v1762, 0.0
  %v1830 = vmax.f32 %v1765, 0.0
  %v1831 = vmax.f32 %v1768, 0.0
  %v1832 = vmax.f32 %v1771, 0.0
  %v1833 = vmax.f32 %v1774, 0.0
  %v1834 = vmax.f32 %v1777, 0.0
  %v1835 = vmax.f32 %v1780, 0.0
  %v1836 = vmax.f32 %v1783, 0.0
  %v1837 = vmax.f32 %v1786, 0.0
  %v1838 = vmax.f32 %v1789, 0.0
  %v1839 = vmax.f32 %v1792, 0.0
  %v1840 = vmax.f32 %v1795, 0.0
  %v1841 = vmax.f32 %v1798, 0.0
  %v1842 = vmax.f32 %v1801, 0.0
  %v1843 = vmax.f32 %v1804, 0.0
  %v1844 = vmax.f32 %v1807, 0.0
  %v1845 = vmax.f32 %v1810, 0.0
  %v1846 = vmax.f32 %v1813, 0.0
  %v1847 = vmin.f32 %v1815, 1.0
  %v1848 = vmin.f32 %v1816, 1.0
  %v1849 = vmin.f32 %v1817, 1.0
  %v1850 = vmin.f32 %v1818, 1.0
  %v1851 = vmin.f32 %v1819, 1.0
  %v1852 = vmin.f32 %v1820, 1.0
  %v1853 = vmin.f32 %v1821, 1.0
  %v1854 = vmin.f32 %v1822, 1.0
  %v1855 = vmin.f32 %v1823, 1.0
  %v1856 = vmin.f32 %v1824, 1.0
  %v1857 = vmin.f32 %v1825, 1.0
  %v1858 = vmin.f32 %v1826, 1.0
  %v1859 = vmin.f32 %v1827, 1.0
  %v1860 = vmin.f32 %v1828, 1.0
  %v1861 = vmin.f32 %v1829, 1.0
  %v1862 = vmin.f32 %v1830, 1.0
  %v1863 = vmin.f32 %v1831, 1.0
  %v1864 = vmin.f32 %v1832, 1.0
  %v1865 = vmin.f32 %v1833, 1.0
  %v1866 = vmin.f32 %v1834, 1.0
  %v1867 = vmin.f32 %v1835, 1.0
  %v1868 = vmin.f32 %v1836, 1.0
  %v1869 = vmin.f32 %v1837, 1.0
  %v1870 = vmin.f32 %v1838, 1.0
  %v1871 = vmin.f32 %v1839, 1.0
  %v1872 = vmin.f32 %v1840, 1.0
  %v1873 = vmin.f32 %v1841, 1.0
  %v1874 = vmin.f32 %v1842, 1.0
  %v1875 = vmin.f32 %v1843, 1.0
  %v1876 = vmin.f32 %v1844, 1.0
  %v1877 = vmin.f32 %v1845, 1.0
  %v1878 = vmin.f32 %v1846, 1.0
  %1879 = vmatpush.msra.mxu0 %v1862
  %1880 = vmatpush.msra.mxu0 %v1861
  %1881 = vmatpush.msra.mxu0 %v1860
  %1882 = vmatpush.msra.mxu0 %v1859
  %1883 = vmatpush.msra.mxu0 %v1858
  %1884 = vmatpush.msra.mxu0 %v1857
  %1885 = vmatpush.msra.mxu0 %v1856
  %1886 = vmatpush.msra.mxu0 %v1855
  %1887 = vmatpush.msra.mxu0 %v1854
  %1888 = vmatpush.msra.mxu0 %v1853
  %1889 = vmatpush.msra.mxu0 %v1852
  %1890 = vmatpush.msra.mxu0 %v1851
  %1891 = vmatpush.msra.mxu0 %v1850
  %1892 = vmatpush.msra.mxu0 %v1849
  %1893 = vmatpush.msra.mxu0 %v1848
  %1894 = vmatpush.msra.mxu0 %v1847
  %1895 = vmatmul.f32.gmra.mxu0 %v11
  %v1896 = vpop.f32.mrf.mxu0
  %v1897 = vadd.f32 %v107, %v1896
  %1898 = vmatmul.f32.gmra.mxu0 %v13
  %v1899 = vpop.f32.mrf.mxu0
  %v1900 = vadd.f32 %v108, %v1899
  %1901 = vmatmul.f32.gmra.mxu0 %v15
  %v1902 = vpop.f32.mrf.mxu0
  %v1903 = vadd.f32 %v109, %v1902
  %1904 = vmatmul.f32.gmra.mxu0 %v17
  %v1905 = vpop.f32.mrf.mxu0
  %v1906 = vadd.f32 %v110, %v1905
  %1907 = vmatmul.f32.gmra.mxu0 %v19
  %v1908 = vpop.f32.mrf.mxu0
  %v1909 = vadd.f32 %v111, %v1908
  %1910 = vmatmul.f32.gmra.mxu0 %v21
  %v1911 = vpop.f32.mrf.mxu0
  %v1912 = vadd.f32 %v112, %v1911
  %1913 = vmatmul.f32.gmra.mxu0 %v23
  %v1914 = vpop.f32.mrf.mxu0
  %v1915 = vadd.f32 %v113, %v1914
  %1916 = vmatmul.f32.gmra.mxu0 %v25
  %v1917 = vpop.f32.mrf.mxu0
  %v1918 = vadd.f32 %v114, %v1917
  %1919 = vmatmul.f32.gmra.mxu0 %v27
  %v1920 = vpop.f32.mrf.mxu0
  %v1921 = vadd.f32 %v115, %v1920
  %1922 = vmatmul.f32.gmra.mxu0 %v29
  %v1923 = vpop.f32.mrf.mxu0
  %v1924 = vadd.f32 %v116, %v1923
  %1925 = vmatmul.f32.gmra.mxu0 %v31
  %v1926 = vpop.f32.mrf.mxu0
  %v1927 = vadd.f32 %v117, %v1926
  %1928 = vmatmul.f32.gmra.mxu0 %v33
  %v1929 = vpop.f32.mrf.mxu0
  %v1930 = vadd.f32 %v118, %v1929
  %1931 = vmatmul.f32.gmra.mxu0 %v35
  %v1932 = vpop.f32.mrf.mxu0
  %v1933 = vadd.f32 %v119, %v1932
  %1934 = vmatmul.f32.gmra.mxu0 %v37
  %v1935 = vpop.f32.mrf.mxu0
  %v1936 = vadd.f32 %v120, %v1935
  %1937 = vmatmul.f32.gmra.mxu0 %v39
  %v1938 = vpop.f32.mrf.mxu0
  %v1939 = vadd.f32 %v121, %v1938
  %1940 = vmatmul.f32.gmra.mxu0 %v41
  %v1941 = vpop.f32.mrf.mxu0
  %v1942 = vadd.f32 %v122, %v1941
  %1943 = vmatmul.f32.gmra.mxu0 %v43
  %v1944 = vpop.f32.mrf.mxu0
  %v1945 = vadd.f32 %v123, %v1944
  %1946 = vmatmul.f32.gmra.mxu0 %v45
  %v1947 = vpop.f32.mrf.mxu0
  %v1948 = vadd.f32 %v124, %v1947
  %1949 = vmatmul.f32.gmra.mxu0 %v47
  %v1950 = vpop.f32.mrf.mxu0
  %v1951 = vadd.f32 %v125, %v1950
  %1952 = vmatmul.f32.gmra.mxu0 %v49
  %v1953 = vpop.f32.mrf.mxu0
  %v1954 = vadd.f32 %v126, %v1953
  %1955 = vmatmul.f32.gmra.mxu0 %v51
  %v1956 = vpop.f32.mrf.mxu0
  %v1957 = vadd.f32 %v127, %v1956
  %1958 = vmatmul.f32.gmra.mxu0 %v53
  %v1959 = vpop.f32.mrf.mxu0
  %v1960 = vadd.f32 %v128, %v1959
  %1961 = vmatmul.f32.gmra.mxu0 %v55
  %v1962 = vpop.f32.mrf.mxu0
  %v1963 = vadd.f32 %v129, %v1962
  %1964 = vmatmul.f32.gmra.mxu0 %v57
  %v1965 = vpop.f32.mrf.mxu0
  %v1966 = vadd.f32 %v130, %v1965
  %1967 = vmatmul.f32.gmra.mxu0 %v59
  %v1968 = vpop.f32.mrf.mxu0
  %v1969 = vadd.f32 %v131, %v1968
  %1970 = vmatmul.f32.gmra.mxu0 %v61
  %v1971 = vpop.f32.mrf.mxu0
  %v1972 = vadd.f32 %v132, %v1971
  %1973 = vmatmul.f32.gmra.mxu0 %v63
  %v1974 = vpop.f32.mrf.mxu0
  %v1975 = vadd.f32 %v133, %v1974
  %1976 = vmatmul.f32.gmra.mxu0 %v65
  %v1977 = vpop.f32.mrf.mxu0
  %v1978 = vadd.f32 %v134, %v1977
  %1979 = vmatmul.f32.gmra.mxu0 %v67
  %v1980 = vpop.f32.mrf.mxu0
  %v1981 = vadd.f32 %v135, %v1980
  %1982 = vmatmul.f32.gmra.mxu0 %v69
  %v1983 = vpop.f32.mrf.mxu0
  %v1984 = vadd.f32 %v136, %v1983
  %1985 = vmatmul.f32.gmra.mxu0 %v71
  %v1986 = vpop.f32.mrf.mxu0
  %v1987 = vadd.f32 %v137, %v1986
  %1988 = vmatmul.f32.gmra.mxu0 %v73
  %v1989 = vpop.f32.mrf.mxu0
  %v1990 = vadd.f32 %v138, %v1989
  %1991 = vdwg.mxu0
  %1992 = vmatpush.msra.mxu0 %v1878
  %1993 = vmatpush.msra.mxu0 %v1877
  %1994 = vmatpush.msra.mxu0 %v1876
  %1995 = vmatpush.msra.mxu0 %v1875
  %1996 = vmatpush.msra.mxu0 %v1874
  %1997 = vmatpush.msra.mxu0 %v1873
  %1998 = vmatpush.msra.mxu0 %v1872
  %1999 = vmatpush.msra.mxu0 %v1871
  %2000 = vmatpush.msra.mxu0 %v1870
  %2001 = vmatpush.msra.mxu0 %v1869
  %2002 = vmatpush.msra.mxu0 %v1868
  %2003 = vmatpush.msra.mxu0 %v1867
  %2004 = vmatpush.msra.mxu0 %v1866
  %2005 = vmatpush.msra.mxu0 %v1865
  %2006 = vmatpush.msra.mxu0 %v1864
  %2007 = vmatpush.msra.mxu0 %v1863
  %2008 = vmatmul.f32.gmra.mxu0 %v12
  %v2009 = vpop.f32.mrf.mxu0
  %v2010 = vadd.f32 %v1897, %v2009
  %2011 = vmatmul.f32.gmra.mxu0 %v14
  %v2012 = vpop.f32.mrf.mxu0
  %v2013 = vadd.f32 %v1900, %v2012
  %2014 = vmatmul.f32.gmra.mxu0 %v16
  %v2015 = vpop.f32.mrf.mxu0
  %v2016 = vadd.f32 %v1903, %v2015
  %2017 = vmatmul.f32.gmra.mxu0 %v18
  %v2018 = vpop.f32.mrf.mxu0
  %v2019 = vadd.f32 %v1906, %v2018
  %2020 = vmatmul.f32.gmra.mxu0 %v20
  %v2021 = vpop.f32.mrf.mxu0
  %v2022 = vadd.f32 %v1909, %v2021
  %2023 = vmatmul.f32.gmra.mxu0 %v22
  %v2024 = vpop.f32.mrf.mxu0
  %v2025 = vadd.f32 %v1912, %v2024
  %2026 = vmatmul.f32.gmra.mxu0 %v24
  %v2027 = vpop.f32.mrf.mxu0
  %v2028 = vadd.f32 %v1915, %v2027
  %2029 = vmatmul.f32.gmra.mxu0 %v26
  %v2030 = vpop.f32.mrf.mxu0
  %v2031 = vadd.f32 %v1918, %v2030
  %2032 = vmatmul.f32.gmra.mxu0 %v28
  %v2033 = vpop.f32.mrf.mxu0
  %v2034 = vadd.f32 %v1921, %v2033
  %2035 = vmatmul.f32.gmra.mxu0 %v30
  %v2036 = vpop.f32.mrf.mxu0
  %v2037 = vadd.f32 %v1924, %v2036
  %2038 = vmatmul.f32.gmra.mxu0 %v32
  %v2039 = vpop.f32.mrf.mxu0
  %v2040 = vadd.f32 %v1927, %v2039
  %2041 = vmatmul.f32.gmra.mxu0 %v34
  %v2042 = vpop.f32.mrf.mxu0
  %v2043 = vadd.f32 %v1930, %v2042
  %2044 = vmatmul.f32.gmra.mxu0 %v36
  %v2045 = vpop.f32.mrf.mxu0
  %v2046 = vadd.f32 %v1933, %v2045
  %2047 = vmatmul.f32.gmra.mxu0 %v38
  %v2048 = vpop.f32.mrf.mxu0
  %v2049 = vadd.f32 %v1936, %v2048
  %2050 = vmatmul.f32.gmra.mxu0 %v40
  %v2051 = vpop.f32.mrf.mxu0
  %v2052 = vadd.f32 %v1939, %v2051
  %2053 = vmatmul.f32.gmra.mxu0 %v42
  %v2054 = vpop.f32.mrf.mxu0
  %v2055 = vadd.f32 %v1942, %v2054
  %2056 = vmatmul.f32.gmra.mxu0 %v44
  %v2057 = vpop.f32.mrf.mxu0
  %v2058 = vadd.f32 %v1945, %v2057
  %2059 = vmatmul.f32.gmra.mxu0 %v46
  %v2060 = vpop.f32.mrf.mxu0
  %v2061 = vadd.f32 %v1948, %v2060
  %2062 = vmatmul.f32.gmra.mxu0 %v48
  %v2063 = vpop.f32.mrf.mxu0
  %v2064 = vadd.f32 %v1951, %v2063
  %2065 = vmatmul.f32.gmra.mxu0 %v50
  %v2066 = vpop.f32.mrf.mxu0
  %v2067 = vadd.f32 %v1954, %v2066
  %2068 = vmatmul.f32.gmra.mxu0 %v52
  %v2069 = vpop.f32.mrf.mxu0
  %v2070 = vadd.f32 %v1957, %v2069
  %2071 = vmatmul.f32.gmra.mxu0 %v54
  %v2072 = vpop.f32.mrf.mxu0
  %v2073 = vadd.f32 %v1960, %v2072
  %2074 = vmatmul.f32.gmra.mxu0 %v56
  %v2075 = vpop.f32.mrf.mxu0
  %v2076 = vadd.f32 %v1963, %v2075
  %2077 = vmatmul.f32.gmra.mxu0 %v58
  %v2078 = vpop.f32.mrf.mxu0
  %v2079 = vadd.f32 %v1966, %v2078
  %2080 = vmatmul.f32.gmra.mxu0 %v60
  %v2081 = vpop.f32.mrf.mxu0
  %v2082 = vadd.f32 %v1969, %v2081
  %2083 = vmatmul.f32.gmra.mxu0 %v62
  %v2084 = vpop.f32.mrf.mxu0
  %v2085 = vadd.f32 %v1972, %v2084
  %2086 = vmatmul.f32.gmra.mxu0 %v64
  %v2087 = vpop.f32.mrf.mxu0
  %v2088 = vadd.f32 %v1975, %v2087
  %2089 = vmatmul.f32.gmra.mxu0 %v66
  %v2090 = vpop.f32.mrf.mxu0
  %v2091 = vadd.f32 %v1978, %v2090
  %2092 = vmatmul.f32.gmra.mxu0 %v68
  %v2093 = vpop.f32.mrf.mxu0
  %v2094 = vadd.f32 %v1981, %v2093
  %2095 = vmatmul.f32.gmra.mxu0 %v70
  %v2096 = vpop.f32.mrf.mxu0
  %v2097 = vadd.f32 %v1984, %v2096
  %2098 = vmatmul.f32.gmra.mxu0 %v72
  %v2099 = vpop.f32.mrf.mxu0
  %v2100 = vadd.f32 %v1987, %v2099
  %2101 = vmatmul.f32.gmra.mxu0 %v74
  %v2102 = vpop.f32.mrf.mxu0
  %v2103 = vadd.f32 %v1990, %v2102
  %2104 = vdwg.mxu0
  %v2105 = vmax.f32 %v2010, 0.0
  %v2106 = vmax.f32 %v2013, 0.0
  %v2107 = vmax.f32 %v2016, 0.0
  %v2108 = vmax.f32 %v2019, 0.0
  %v2109 = vmax.f32 %v2022, 0.0
  %v2110 = vmax.f32 %v2025, 0.0
  %v2111 = vmax.f32 %v2028, 0.0
  %v2112 = vmax.f32 %v2031, 0.0
  %v2113 = vmax.f32 %v2034, 0.0
  %v2114 = vmax.f32 %v2037, 0.0
  %v2115 = vmax.f32 %v2040, 0.0
  %v2116 = vmax.f32 %v2043, 0.0
  %v2117 = vmax.f32 %v2046, 0.0
  %v2118 = vmax.f32 %v2049, 0.0
  %v2119 = vmax.f32 %v2052, 0.0
  %v2120 = vmax.f32 %v2055, 0.0
  %v2121 = vmax.f32 %v2058, 0.0
  %v2122 = vmax.f32 %v2061, 0.0
  %v2123 = vmax.f32 %v2064, 0.0
  %v2124 = vmax.f32 %v2067, 0.0
  %v2125 = vmax.f32 %v2070, 0.0
  %v2126 = vmax.f32 %v2073, 0.0
  %v2127 = vmax.f32 %v2076, 0.0
  %v2128 = vmax.f32 %v2079, 0.0
  %v2129 = vmax.f32 %v2082, 0.0
  %v2130 = vmax.f32 %v2085, 0.0
  %v2131 = vmax.f32 %v2088, 0.0
  %v2132 = vmax.f32 %v2091, 0.0
  %v2133 = vmax.f32 %v2094, 0.0
  %v2134 = vmax.f32 %v2097, 0.0
  %v2135 = vmax.f32 %v2100, 0.0
  %v2136 = vmax.f32 %v2103, 0.0
  %v2137 = vmin.f32 %v2105, 1.0
  %v2138 = vmin.f32 %v2106, 1.0
  %v2139 = vmin.f32 %v2107, 1.0
  %v2140 = vmin.f32 %v2108, 1.0
  %v2141 = vmin.f32 %v2109, 1.0
  %v2142 = vmin.f32 %v2110, 1.0
  %v2143 = vmin.f32 %v2111, 1.0
  %v2144 = vmin.f32 %v2112, 1.0
  %v2145 = vmin.f32 %v2113, 1.0
  %v2146 = vmin.f32 %v2114, 1.0
  %v2147 = vmin.f32 %v2115, 1.0
  %v2148 = vmin.f32 %v2116, 1.0
  %v2149 = vmin.f32 %v2117, 1.0
  %v2150 = vmin.f32 %v2118, 1.0
  %v2151 = vmin.f32 %v2119, 1.0
  %v2152 = vmin.f32 %v2120, 1.0
  %v2153 = vmin.f32 %v2121, 1.0
  %v2154 = vmin.f32 %v2122, 1.0
  %v2155 = vmin.f32 %v2123, 1.0
  %v2156 = vmin.f32 %v2124, 1.0
  %v2157 = vmin.f32 %v2125, 1.0
  %v2158 = vmin.f32 %v2126, 1.0
  %v2159 = vmin.f32 %v2127, 1.0
  %v2160 = vmin.f32 %v2128, 1.0
  %v2161 = vmin.f32 %v2129, 1.0
  %v2162 = vmin.f32 %v2130, 1.0
  %v2163 = vmin.f32 %v2131, 1.0
  %v2164 = vmin.f32 %v2132, 1.0
  %v2165 = vmin.f32 %v2133, 1.0
  %v2166 = vmin.f32 %v2134, 1.0
  %v2167 = vmin.f32 %v2135, 1.0
  %v2168 = vmin.f32 %v2136, 1.0
  %2169 = vmatpush.msra.mxu0 %v2152
  %2170 = vmatpush.msra.mxu0 %v2151
  %2171 = vmatpush.msra.mxu0 %v2150
  %2172 = vmatpush.msra.mxu0 %v2149
  %2173 = vmatpush.msra.mxu0 %v2148
  %2174 = vmatpush.msra.mxu0 %v2147
  %2175 = vmatpush.msra.mxu0 %v2146
  %2176 = vmatpush.msra.mxu0 %v2145
  %2177 = vmatpush.msra.mxu0 %v2144
  %2178 = vmatpush.msra.mxu0 %v2143
  %2179 = vmatpush.msra.mxu0 %v2142
  %2180 = vmatpush.msra.mxu0 %v2141
  %2181 = vmatpush.msra.mxu0 %v2140
  %2182 = vmatpush.msra.mxu0 %v2139
  %2183 = vmatpush.msra.mxu0 %v2138
  %2184 = vmatpush.msra.mxu0 %v2137
  %2185 = vmatmul.f32.gmra.mxu0 %v11
  %v2186 = vpop.f32.mrf.mxu0
  %v2187 = vadd.f32 %v107, %v2186
  %2188 = vmatmul.f32.gmra.mxu0 %v13
  %v2189 = vpop.f32.mrf.mxu0
  %v2190 = vadd.f32 %v108, %v2189
  %2191 = vmatmul.f32.gmra.mxu0 %v15
  %v2192 = vpop.f32.mrf.mxu0
  %v2193 = vadd.f32 %v109, %v2192
  %2194 = vmatmul.f32.gmra.mxu0 %v17
  %v2195 = vpop.f32.mrf.mxu0
  %v2196 = vadd.f32 %v110, %v2195
  %2197 = vmatmul.f32.gmra.mxu0 %v19
  %v2198 = vpop.f32.mrf.mxu0
  %v2199 = vadd.f32 %v111, %v2198
  %2200 = vmatmul.f32.gmra.mxu0 %v21
  %v2201 = vpop.f32.mrf.mxu0
  %v2202 = vadd.f32 %v112, %v2201
  %2203 = vmatmul.f32.gmra.mxu0 %v23
  %v2204 = vpop.f32.mrf.mxu0
  %v2205 = vadd.f32 %v113, %v2204
  %2206 = vmatmul.f32.gmra.mxu0 %v25
  %v2207 = vpop.f32.mrf.mxu0
  %v2208 = vadd.f32 %v114, %v2207
  %2209 = vmatmul.f32.gmra.mxu0 %v27
  %v2210 = vpop.f32.mrf.mxu0
  %v2211 = vadd.f32 %v115, %v2210
  %2212 = vmatmul.f32.gmra.mxu0 %v29
  %v2213 = vpop.f32.mrf.mxu0
  %v2214 = vadd.f32 %v116, %v2213
  %2215 = vmatmul.f32.gmra.mxu0 %v31
  %v2216 = vpop.f32.mrf.mxu0
  %v2217 = vadd.f32 %v117, %v2216
  %2218 = vmatmul.f32.gmra.mxu0 %v33
  %v2219 = vpop.f32.mrf.mxu0
  %v2220 = vadd.f32 %v118, %v2219
  %2221 = vmatmul.f32.gmra.mxu0 %v35
  %v2222 = vpop.f32.mrf.mxu0
  %v2223 = vadd.f32 %v119, %v2222
  %2224 = vmatmul.f32.gmra.mxu0 %v37
  %v2225 = vpop.f32.mrf.mxu0
  %v2226 = vadd.f32 %v120, %v2225
  %2227 = vmatmul.f32.gmra.mxu0 %v39
  %v2228 = vpop.f32.mrf.mxu0
  %v2229 = vadd.f32 %v121, %v2228
  %2230 = vmatmul.f32.gmra.mxu0 %v41
  %v2231 = vpop.f32.mrf.mxu0
  %v2232 = vadd.f32 %v122, %v2231
  %2233 = vmatmul.f32.gmra.mxu0 %v43
  %v2234 = vpop.f32.mrf.mxu0
  %v2235 = vadd.f32 %v123, %v2234
  %2236 = vmatmul.f32.gmra.mxu0 %v45
  %v2237 = vpop.f32.mrf.mxu0
  %v2238 = vadd.f32 %v124, %v2237
  %2239 = vmatmul.f32.gmra.mxu0 %v47
  %v2240 = vpop.f32.mrf.mxu0
  %v2241 = vadd.f32 %v125, %v2240
  %2242 = vmatmul.f32.gmra.mxu0 %v49
  %v2243 = vpop.f32.mrf.mxu0
  %v2244 = vadd.f32 %v126, %v2243
  %2245 = vmatmul.f32.gmra.mxu0 %v51
  %v2246 = vpop.f32.mrf.mxu0
  %v2247 = vadd.f32 %v127, %v2246
  %2248 = vmatmul.f32.gmra.mxu0 %v53
  %v2249 = vpop.f32.mrf.mxu0
  %v2250 = vadd.f32 %v128, %v2249
  %2251 = vmatmul.f32.gmra.mxu0 %v55
  %v2252 = vpop.f32.mrf.mxu0
  %v2253 = vadd.f32 %v129, %v2252
  %2254 = vmatmul.f32.gmra.mxu0 %v57
  %v2255 = vpop.f32.mrf.mxu0
  %v2256 = vadd.f32 %v130, %v2255
  %2257 = vmatmul.f32.gmra.mxu0 %v59
  %v2258 = vpop.f32.mrf.mxu0
  %v2259 = vadd.f32 %v131, %v2258
  %2260 = vmatmul.f32.gmra.mxu0 %v61
  %v2261 = vpop.f32.mrf.mxu0
  %v2262 = vadd.f32 %v132, %v2261
  %2263 = vmatmul.f32.gmra.mxu0 %v63
  %v2264 = vpop.f32.mrf.mxu0
  %v2265 = vadd.f32 %v133, %v2264
  %2266 = vmatmul.f32.gmra.mxu0 %v65
  %v2267 = vpop.f32.mrf.mxu0
  %v2268 = vadd.f32 %v134, %v2267
  %2269 = vmatmul.f32.gmra.mxu0 %v67
  %v2270 = vpop.f32.mrf.mxu0
  %v2271 = vadd.f32 %v135, %v2270
  %2272 = vmatmul.f32.gmra.mxu0 %v69
  %v2273 = vpop.f32.mrf.mxu0
  %v2274 = vadd.f32 %v136, %v2273
  %2275 = vmatmul.f32.gmra.mxu0 %v71
  %v2276 = vpop.f32.mrf.mxu0
  %v2277 = vadd.f32 %v137, %v2276
  %2278 = vmatmul.f32.gmra.mxu0 %v73
  %v2279 = vpop.f32.mrf.mxu0
  %v2280 = vadd.f32 %v138, %v2279
  %2281 = vdwg.mxu0
  %2282 = vmatpush.msra.mxu0 %v2168
  %2283 = vmatpush.msra.mxu0 %v2167
  %2284 = vmatpush.msra.mxu0 %v2166
  %2285 = vmatpush.msra.mxu0 %v2165
  %2286 = vmatpush.msra.mxu0 %v2164
  %2287 = vmatpush.msra.mxu0 %v2163
  %2288 = vmatpush.msra.mxu0 %v2162
  %2289 = vmatpush.msra.mxu0 %v2161
  %2290 = vmatpush.msra.mxu0 %v2160
  %2291 = vmatpush.msra.mxu0 %v2159
  %2292 = vmatpush.msra.mxu0 %v2158
  %2293 = vmatpush.msra.mxu0 %v2157
  %2294 = vmatpush.msra.mxu0 %v2156
  %2295 = vmatpush.msra.mxu0 %v2155
  %2296 = vmatpush.msra.mxu0 %v2154
  %2297 = vmatpush.msra.mxu0 %v2153
  %2298 = vmatmul.f32.gmra.mxu0 %v12
  %v2299 = vpop.f32.mrf.mxu0
  %v2300 = vadd.f32 %v2187, %v2299
  %2301 = vmatmul.f32.gmra.mxu0 %v14
  %v2302 = vpop.f32.mrf.mxu0
  %v2303 = vadd.f32 %v2190, %v2302
  %2304 = vmatmul.f32.gmra.mxu0 %v16
  %v2305 = vpop.f32.mrf.mxu0
  %v2306 = vadd.f32 %v2193, %v2305
  %2307 = vmatmul.f32.gmra.mxu0 %v18
  %v2308 = vpop.f32.mrf.mxu0
  %v2309 = vadd.f32 %v2196, %v2308
  %2310 = vmatmul.f32.gmra.mxu0 %v20
  %v2311 = vpop.f32.mrf.mxu0
  %v2312 = vadd.f32 %v2199, %v2311
  %2313 = vmatmul.f32.gmra.mxu0 %v22
  %v2314 = vpop.f32.mrf.mxu0
  %v2315 = vadd.f32 %v2202, %v2314
  %2316 = vmatmul.f32.gmra.mxu0 %v24
  %v2317 = vpop.f32.mrf.mxu0
  %v2318 = vadd.f32 %v2205, %v2317
  %2319 = vmatmul.f32.gmra.mxu0 %v26
  %v2320 = vpop.f32.mrf.mxu0
  %v2321 = vadd.f32 %v2208, %v2320
  %2322 = vmatmul.f32.gmra.mxu0 %v28
  %v2323 = vpop.f32.mrf.mxu0
  %v2324 = vadd.f32 %v2211, %v2323
  %2325 = vmatmul.f32.gmra.mxu0 %v30
  %v2326 = vpop.f32.mrf.mxu0
  %v2327 = vadd.f32 %v2214, %v2326
  %2328 = vmatmul.f32.gmra.mxu0 %v32
  %v2329 = vpop.f32.mrf.mxu0
  %v2330 = vadd.f32 %v2217, %v2329
  %2331 = vmatmul.f32.gmra.mxu0 %v34
  %v2332 = vpop.f32.mrf.mxu0
  %v2333 = vadd.f32 %v2220, %v2332
  %2334 = vmatmul.f32.gmra.mxu0 %v36
  %v2335 = vpop.f32.mrf.mxu0
  %v2336 = vadd.f32 %v2223, %v2335
  %2337 = vmatmul.f32.gmra.mxu0 %v38
  %v2338 = vpop.f32.mrf.mxu0
  %v2339 = vadd.f32 %v2226, %v2338
  %2340 = vmatmul.f32.gmra.mxu0 %v40
  %v2341 = vpop.f32.mrf.mxu0
  %v2342 = vadd.f32 %v2229, %v2341
  %2343 = vmatmul.f32.gmra.mxu0 %v42
  %v2344 = vpop.f32.mrf.mxu0
  %v2345 = vadd.f32 %v2232, %v2344
  %2346 = vmatmul.f32.gmra.mxu0 %v44
  %v2347 = vpop.f32.mrf.mxu0
  %v2348 = vadd.f32 %v2235, %v2347
  %2349 = vmatmul.f32.gmra.mxu0 %v46
  %v2350 = vpop.f32.mrf.mxu0
  %v2351 = vadd.f32 %v2238, %v2350
  %2352 = vmatmul.f32.gmra.mxu0 %v48
  %v2353 = vpop.f32.mrf.mxu0
  %v2354 = vadd.f32 %v2241, %v2353
  %2355 = vmatmul.f32.gmra.mxu0 %v50
  %v2356 = vpop.f32.mrf.mxu0
  %v2357 = vadd.f32 %v2244, %v2356
  %2358 = vmatmul.f32.gmra.mxu0 %v52
  %v2359 = vpop.f32.mrf.mxu0
  %v2360 = vadd.f32 %v2247, %v2359
  %2361 = vmatmul.f32.gmra.mxu0 %v54
  %v2362 = vpop.f32.mrf.mxu0
  %v2363 = vadd.f32 %v2250, %v2362
  %2364 = vmatmul.f32.gmra.mxu0 %v56
  %v2365 = vpop.f32.mrf.mxu0
  %v2366 = vadd.f32 %v2253, %v2365
  %2367 = vmatmul.f32.gmra.mxu0 %v58
  %v2368 = vpop.f32.mrf.mxu0
  %v2369 = vadd.f32 %v2256, %v2368
  %2370 = vmatmul.f32.gmra.mxu0 %v60
  %v2371 = vpop.f32.mrf.mxu0
  %v2372 = vadd.f32 %v2259, %v2371
  %2373 = vmatmul.f32.gmra.mxu0 %v62
  %v2374 = vpop.f32.mrf.mxu0
  %v2375 = vadd.f32 %v2262, %v2374
  %2376 = vmatmul.f32.gmra.mxu0 %v64
  %v2377 = vpop.f32.mrf.mxu0
  %v2378 = vadd.f32 %v2265, %v2377
  %2379 = vmatmul.f32.gmra.mxu0 %v66
  %v2380 = vpop.f32.mrf.mxu0
  %v2381 = vadd.f32 %v2268, %v2380
  %2382 = vmatmul.f32.gmra.mxu0 %v68
  %v2383 = vpop.f32.mrf.mxu0
  %v2384 = vadd.f32 %v2271, %v2383
  %2385 = vmatmul.f32.gmra.mxu0 %v70
  %v2386 = vpop.f32.mrf.mxu0
  %v2387 = vadd.f32 %v2274, %v2386
  %2388 = vmatmul.f32.gmra.mxu0 %v72
  %v2389 = vpop.f32.mrf.mxu0
  %v2390 = vadd.f32 %v2277, %v2389
  %2391 = vmatmul.f32.gmra.mxu0 %v74
  %v2392 = vpop.f32.mrf.mxu0
  %v2393 = vadd.f32 %v2280, %v2392
  %2394 = vdwg.mxu0
  %v2395 = vmax.f32 %v2300, 0.0
  %v2396 = vmax.f32 %v2303, 0.0
  %v2397 = vmax.f32 %v2306, 0.0
  %v2398 = vmax.f32 %v2309, 0.0
  %v2399 = vmax.f32 %v2312, 0.0
  %v2400 = vmax.f32 %v2315, 0.0
  %v2401 = vmax.f32 %v2318, 0.0
  %v2402 = vmax.f32 %v2321, 0.0
  %v2403 = vmax.f32 %v2324, 0.0
  %v2404 = vmax.f32 %v2327, 0.0
  %v2405 = vmax.f32 %v2330, 0.0
  %v2406 = vmax.f32 %v2333, 0.0
  %v2407 = vmax.f32 %v2336, 0.0
  %v2408 = vmax.f32 %v2339, 0.0
  %v2409 = vmax.f32 %v2342, 0.0
  %v2410 = vmax.f32 %v2345, 0.0
  %v2411 = vmax.f32 %v2348, 0.0
  %v2412 = vmax.f32 %v2351, 0.0
  %v2413 = vmax.f32 %v2354, 0.0
  %v2414 = vmax.f32 %v2357, 0.0
  %v2415 = vmax.f32 %v2360, 0.0
  %v2416 = vmax.f32 %v2363, 0.0
  %v2417 = vmax.f32 %v2366, 0.0
  %v2418 = vmax.f32 %v2369, 0.0
  %v2419 = vmax.f32 %v2372, 0.0
  %v2420 = vmax.f32 %v2375, 0.0
  %v2421 = vmax.f32 %v2378, 0.0
  %v2422 = vmax.f32 %v2381, 0.0
  %v2423 = vmax.f32 %v2384, 0.0
  %v2424 = vmax.f32 %v2387, 0.0
  %v2425 = vmax.f32 %v2390, 0.0
  %v2426 = vmax.f32 %v2393, 0.0
  %v2427 = vmin.f32 %v2395, 1.0
  %v2428 = vmin.f32 %v2396, 1.0
  %v2429 = vmin.f32 %v2397, 1.0
  %v2430 = vmin.f32 %v2398, 1.0
  %v2431 = vmin.f32 %v2399, 1.0
  %v2432 = vmin.f32 %v2400, 1.0
  %v2433 = vmin.f32 %v2401, 1.0
  %v2434 = vmin.f32 %v2402, 1.0
  %v2435 = vmin.f32 %v2403, 1.0
  %v2436 = vmin.f32 %v2404, 1.0
  %v2437 = vmin.f32 %v2405, 1.0
  %v2438 = vmin.f32 %v2406, 1.0
  %v2439 = vmin.f32 %v2407, 1.0
  %v2440 = vmin.f32 %v2408, 1.0
  %v2441 = vmin.f32 %v2409, 1.0
  %v2442 = vmin.f32 %v2410, 1.0
  %v2443 = vmin.f32 %v2411, 1.0
  %v2444 = vmin.f32 %v2412, 1.0
  %v2445 = vmin.f32 %v2413, 1.0
  %v2446 = vmin.f32 %v2414, 1.0
  %v2447 = vmin.f32 %v2415, 1.0
  %v2448 = vmin.f32 %v2416, 1.0
  %v2449 = vmin.f32 %v2417, 1.0
  %v2450 = vmin.f32 %v2418, 1.0
  %v2451 = vmin.f32 %v2419, 1.0
  %v2452 = vmin.f32 %v2420, 1.0
  %v2453 = vmin.f32 %v2421, 1.0
  %v2454 = vmin.f32 %v2422, 1.0
  %v2455 = vmin.f32 %v2423, 1.0
  %v2456 = vmin.f32 %v2424, 1.0
  %v2457 = vmin.f32 %v2425, 1.0
  %v2458 = vmin.f32 %v2426, 1.0
  %2459 = vmatpush.msra.mxu0 %v2442
  %2460 = vmatpush.msra.mxu0 %v2441
  %2461 = vmatpush.msra.mxu0 %v2440
  %2462 = vmatpush.msra.mxu0 %v2439
  %2463 = vmatpush.msra.mxu0 %v2438
  %2464 = vmatpush.msra.mxu0 %v2437
  %2465 = vmatpush.msra.mxu0 %v2436
  %2466 = vmatpush.msra.mxu0 %v2435
  %2467 = vmatpush.msra.mxu0 %v2434
  %2468 = vmatpush.msra.mxu0 %v2433
  %2469 = vmatpush.msra.mxu0 %v2432
  %2470 = vmatpush.msra.mxu0 %v2431
  %2471 = vmatpush.msra.mxu0 %v2430
  %2472 = vmatpush.msra.mxu0 %v2429
  %2473 = vmatpush.msra.mxu0 %v2428
  %2474 = vmatpush.msra.mxu0 %v2427
  %2475 = vmatmul.f32.gmra.mxu0 %v11
  %v2476 = vpop.f32.mrf.mxu0
  %v2477 = vadd.f32 %v107, %v2476
  %2478 = vmatmul.f32.gmra.mxu0 %v13
  %v2479 = vpop.f32.mrf.mxu0
  %v2480 = vadd.f32 %v108, %v2479
  %2481 = vmatmul.f32.gmra.mxu0 %v15
  %v2482 = vpop.f32.mrf.mxu0
  %v2483 = vadd.f32 %v109, %v2482
  %2484 = vmatmul.f32.gmra.mxu0 %v17
  %v2485 = vpop.f32.mrf.mxu0
  %v2486 = vadd.f32 %v110, %v2485
  %2487 = vmatmul.f32.gmra.mxu0 %v19
  %v2488 = vpop.f32.mrf.mxu0
  %v2489 = vadd.f32 %v111, %v2488
  %2490 = vmatmul.f32.gmra.mxu0 %v21
  %v2491 = vpop.f32.mrf.mxu0
  %v2492 = vadd.f32 %v112, %v2491
  %2493 = vmatmul.f32.gmra.mxu0 %v23
  %v2494 = vpop.f32.mrf.mxu0
  %v2495 = vadd.f32 %v113, %v2494
  %2496 = vmatmul.f32.gmra.mxu0 %v25
  %v2497 = vpop.f32.mrf.mxu0
  %v2498 = vadd.f32 %v114, %v2497
  %2499 = vmatmul.f32.gmra.mxu0 %v27
  %v2500 = vpop.f32.mrf.mxu0
  %v2501 = vadd.f32 %v115, %v2500
  %2502 = vmatmul.f32.gmra.mxu0 %v29
  %v2503 = vpop.f32.mrf.mxu0
  %v2504 = vadd.f32 %v116, %v2503
  %2505 = vmatmul.f32.gmra.mxu0 %v31
  %v2506 = vpop.f32.mrf.mxu0
  %v2507 = vadd.f32 %v117, %v2506
  %2508 = vmatmul.f32.gmra.mxu0 %v33
  %v2509 = vpop.f32.mrf.mxu0
  %v2510 = vadd.f32 %v118, %v2509
  %2511 = vmatmul.f32.gmra.mxu0 %v35
  %v2512 = vpop.f32.mrf.mxu0
  %v2513 = vadd.f32 %v119, %v2512
  %2514 = vmatmul.f32.gmra.mxu0 %v37
  %v2515 = vpop.f32.mrf.mxu0
  %v2516 = vadd.f32 %v120, %v2515
  %2517 = vmatmul.f32.gmra.mxu0 %v39
  %v2518 = vpop.f32.mrf.mxu0
  %v2519 = vadd.f32 %v121, %v2518
  %2520 = vmatmul.f32.gmra.mxu0 %v41
  %v2521 = vpop.f32.mrf.mxu0
  %v2522 = vadd.f32 %v122, %v2521
  %2523 = vmatmul.f32.gmra.mxu0 %v43
  %v2524 = vpop.f32.mrf.mxu0
  %v2525 = vadd.f32 %v123, %v2524
  %2526 = vmatmul.f32.gmra.mxu0 %v45
  %v2527 = vpop.f32.mrf.mxu0
  %v2528 = vadd.f32 %v124, %v2527
  %2529 = vmatmul.f32.gmra.mxu0 %v47
  %v2530 = vpop.f32.mrf.mxu0
  %v2531 = vadd.f32 %v125, %v2530
  %2532 = vmatmul.f32.gmra.mxu0 %v49
  %v2533 = vpop.f32.mrf.mxu0
  %v2534 = vadd.f32 %v126, %v2533
  %2535 = vmatmul.f32.gmra.mxu0 %v51
  %v2536 = vpop.f32.mrf.mxu0
  %v2537 = vadd.f32 %v127, %v2536
  %2538 = vmatmul.f32.gmra.mxu0 %v53
  %v2539 = vpop.f32.mrf.mxu0
  %v2540 = vadd.f32 %v128, %v2539
  %2541 = vmatmul.f32.gmra.mxu0 %v55
  %v2542 = vpop.f32.mrf.mxu0
  %v2543 = vadd.f32 %v129, %v2542
  %2544 = vmatmul.f32.gmra.mxu0 %v57
  %v2545 = vpop.f32.mrf.mxu0
  %v2546 = vadd.f32 %v130, %v2545
  %2547 = vmatmul.f32.gmra.mxu0 %v59
  %v2548 = vpop.f32.mrf.mxu0
  %v2549 = vadd.f32 %v131, %v2548
  %2550 = vmatmul.f32.gmra.mxu0 %v61
  %v2551 = vpop.f32.mrf.mxu0
  %v2552 = vadd.f32 %v132, %v2551
  %2553 = vmatmul.f32.gmra.mxu0 %v63
  %v2554 = vpop.f32.mrf.mxu0
  %v2555 = vadd.f32 %v133, %v2554
  %2556 = vmatmul.f32.gmra.mxu0 %v65
  %v2557 = vpop.f32.mrf.mxu0
  %v2558 = vadd.f32 %v134, %v2557
  %2559 = vmatmul.f32.gmra.mxu0 %v67
  %v2560 = vpop.f32.mrf.mxu0
  %v2561 = vadd.f32 %v135, %v2560
  %2562 = vmatmul.f32.gmra.mxu0 %v69
  %v2563 = vpop.f32.mrf.mxu0
  %v2564 = vadd.f32 %v136, %v2563
  %2565 = vmatmul.f32.gmra.mxu0 %v71
  %v2566 = vpop.f32.mrf.mxu0
  %v2567 = vadd.f32 %v137, %v2566
  %2568 = vmatmul.f32.gmra.mxu0 %v73
  %v2569 = vpop.f32.mrf.mxu0
  %v2570 = vadd.f32 %v138, %v2569
  %2571 = vdwg.mxu0
  %2572 = vmatpush.msra.mxu0 %v2458
  %2573 = vmatpush.msra.mxu0 %v2457
  %2574 = vmatpush.msra.mxu0 %v2456
  %2575 = vmatpush.msra.mxu0 %v2455
  %2576 = vmatpush.msra.mxu0 %v2454
  %2577 = vmatpush.msra.mxu0 %v2453
  %2578 = vmatpush.msra.mxu0 %v2452
  %2579 = vmatpush.msra.mxu0 %v2451
  %2580 = vmatpush.msra.mxu0 %v2450
  %2581 = vmatpush.msra.mxu0 %v2449
  %2582 = vmatpush.msra.mxu0 %v2448
  %2583 = vmatpush.msra.mxu0 %v2447
  %2584 = vmatpush.msra.mxu0 %v2446
  %2585 = vmatpush.msra.mxu0 %v2445
  %2586 = vmatpush.msra.mxu0 %v2444
  %2587 = vmatpush.msra.mxu0 %v2443
  %2588 = vmatmul.f32.gmra.mxu0 %v12
  %v2589 = vpop.f32.mrf.mxu0
  %v2590 = vadd.f32 %v2477, %v2589
  %2591 = vmatmul.f32.gmra.mxu0 %v14
  %v2592 = vpop.f32.mrf.mxu0
  %v2593 = vadd.f32 %v2480, %v2592
  %2594 = vmatmul.f32.gmra.mxu0 %v16
  %v2595 = vpop.f32.mrf.mxu0
  %v2596 = vadd.f32 %v2483, %v2595
  %2597 = vmatmul.f32.gmra.mxu0 %v18
  %v2598 = vpop.f32.mrf.mxu0
  %v2599 = vadd.f32 %v2486, %v2598
  %2600 = vmatmul.f32.gmra.mxu0 %v20
  %v2601 = vpop.f32.mrf.mxu0
  %v2602 = vadd.f32 %v2489, %v2601
  %2603 = vmatmul.f32.gmra.mxu0 %v22
  %v2604 = vpop.f32.mrf.mxu0
  %v2605 = vadd.f32 %v2492, %v2604
  %2606 = vmatmul.f32.gmra.mxu0 %v24
  %v2607 = vpop.f32.mrf.mxu0
  %v2608 = vadd.f32 %v2495, %v2607
  %2609 = vmatmul.f32.gmra.mxu0 %v26
  %v2610 = vpop.f32.mrf.mxu0
  %v2611 = vadd.f32 %v2498, %v2610
  %2612 = vmatmul.f32.gmra.mxu0 %v28
  %v2613 = vpop.f32.mrf.mxu0
  %v2614 = vadd.f32 %v2501, %v2613
  %2615 = vmatmul.f32.gmra.mxu0 %v30
  %v2616 = vpop.f32.mrf.mxu0
  %v2617 = vadd.f32 %v2504, %v2616
  %2618 = vmatmul.f32.gmra.mxu0 %v32
  %v2619 = vpop.f32.mrf.mxu0
  %v2620 = vadd.f32 %v2507, %v2619
  %2621 = vmatmul.f32.gmra.mxu0 %v34
  %v2622 = vpop.f32.mrf.mxu0
  %v2623 = vadd.f32 %v2510, %v2622
  %2624 = vmatmul.f32.gmra.mxu0 %v36
  %v2625 = vpop.f32.mrf.mxu0
  %v2626 = vadd.f32 %v2513, %v2625
  %2627 = vmatmul.f32.gmra.mxu0 %v38
  %v2628 = vpop.f32.mrf.mxu0
  %v2629 = vadd.f32 %v2516, %v2628
  %2630 = vmatmul.f32.gmra.mxu0 %v40
  %v2631 = vpop.f32.mrf.mxu0
  %v2632 = vadd.f32 %v2519, %v2631
  %2633 = vmatmul.f32.gmra.mxu0 %v42
  %v2634 = vpop.f32.mrf.mxu0
  %v2635 = vadd.f32 %v2522, %v2634
  %2636 = vmatmul.f32.gmra.mxu0 %v44
  %v2637 = vpop.f32.mrf.mxu0
  %v2638 = vadd.f32 %v2525, %v2637
  %2639 = vmatmul.f32.gmra.mxu0 %v46
  %v2640 = vpop.f32.mrf.mxu0
  %v2641 = vadd.f32 %v2528, %v2640
  %2642 = vmatmul.f32.gmra.mxu0 %v48
  %v2643 = vpop.f32.mrf.mxu0
  %v2644 = vadd.f32 %v2531, %v2643
  %2645 = vmatmul.f32.gmra.mxu0 %v50
  %v2646 = vpop.f32.mrf.mxu0
  %v2647 = vadd.f32 %v2534, %v2646
  %2648 = vmatmul.f32.gmra.mxu0 %v52
  %v2649 = vpop.f32.mrf.mxu0
  %v2650 = vadd.f32 %v2537, %v2649
  %2651 = vmatmul.f32.gmra.mxu0 %v54
  %v2652 = vpop.f32.mrf.mxu0
  %v2653 = vadd.f32 %v2540, %v2652
  %2654 = vmatmul.f32.gmra.mxu0 %v56
  %v2655 = vpop.f32.mrf.mxu0
  %v2656 = vadd.f32 %v2543, %v2655
  %2657 = vmatmul.f32.gmra.mxu0 %v58
  %v2658 = vpop.f32.mrf.mxu0
  %v2659 = vadd.f32 %v2546, %v2658
  %2660 = vmatmul.f32.gmra.mxu0 %v60
  %v2661 = vpop.f32.mrf.mxu0
  %v2662 = vadd.f32 %v2549, %v2661
  %2663 = vmatmul.f32.gmra.mxu0 %v62
  %v2664 = vpop.f32.mrf.mxu0
  %v2665 = vadd.f32 %v2552, %v2664
  %2666 = vmatmul.f32.gmra.mxu0 %v64
  %v2667 = vpop.f32.mrf.mxu0
  %v2668 = vadd.f32 %v2555, %v2667
  %2669 = vmatmul.f32.gmra.mxu0 %v66
  %v2670 = vpop.f32.mrf.mxu0
  %v2671 = vadd.f32 %v2558, %v2670
  %2672 = vmatmul.f32.gmra.mxu0 %v68
  %v2673 = vpop.f32.mrf.mxu0
  %v2674 = vadd.f32 %v2561, %v2673
  %2675 = vmatmul.f32.gmra.mxu0 %v70
  %v2676 = vpop.f32.mrf.mxu0
  %v2677 = vadd.f32 %v2564, %v2676
  %2678 = vmatmul.f32.gmra.mxu0 %v72
  %v2679 = vpop.f32.mrf.mxu0
  %v2680 = vadd.f32 %v2567, %v2679
  %2681 = vmatmul.f32.gmra.mxu0 %v74
  %v2682 = vpop.f32.mrf.mxu0
  %v2683 = vadd.f32 %v2570, %v2682
  %2684 = vdwg.mxu0
  %v2685 = vmax.f32 %v2590, 0.0
  %v2686 = vmax.f32 %v2593, 0.0
  %v2687 = vmax.f32 %v2596, 0.0
  %v2688 = vmax.f32 %v2599, 0.0
  %v2689 = vmax.f32 %v2602, 0.0
  %v2690 = vmax.f32 %v2605, 0.0
  %v2691 = vmax.f32 %v2608, 0.0
  %v2692 = vmax.f32 %v2611, 0.0
  %v2693 = vmax.f32 %v2614, 0.0
  %v2694 = vmax.f32 %v2617, 0.0
  %v2695 = vmax.f32 %v2620, 0.0
  %v2696 = vmax.f32 %v2623, 0.0
  %v2697 = vmax.f32 %v2626, 0.0
  %v2698 = vmax.f32 %v2629, 0.0
  %v2699 = vmax.f32 %v2632, 0.0
  %v2700 = vmax.f32 %v2635, 0.0
  %v2701 = vmax.f32 %v2638, 0.0
  %v2702 = vmax.f32 %v2641, 0.0
  %v2703 = vmax.f32 %v2644, 0.0
  %v2704 = vmax.f32 %v2647, 0.0
  %v2705 = vmax.f32 %v2650, 0.0
  %v2706 = vmax.f32 %v2653, 0.0
  %v2707 = vmax.f32 %v2656, 0.0
  %v2708 = vmax.f32 %v2659, 0.0
  %v2709 = vmax.f32 %v2662, 0.0
  %v2710 = vmax.f32 %v2665, 0.0
  %v2711 = vmax.f32 %v2668, 0.0
  %v2712 = vmax.f32 %v2671, 0.0
  %v2713 = vmax.f32 %v2674, 0.0
  %v2714 = vmax.f32 %v2677, 0.0
  %v2715 = vmax.f32 %v2680, 0.0
  %v2716 = vmax.f32 %v2683, 0.0
  %v2717 = vmin.f32 %v2685, 1.0
  %v2718 = vmin.f32 %v2686, 1.0
  %v2719 = vmin.f32 %v2687, 1.0
  %v2720 = vmin.f32 %v2688, 1.0
  %v2721 = vmin.f32 %v2689, 1.0
  %v2722 = vmin.f32 %v2690, 1.0
  %v2723 = vmin.f32 %v2691, 1.0
  %v2724 = vmin.f32 %v2692, 1.0
  %v2725 = vmin.f32 %v2693, 1.0
  %v2726 = vmin.f32 %v2694, 1.0
  %v2727 = vmin.f32 %v2695, 1.0
  %v2728 = vmin.f32 %v2696, 1.0
  %v2729 = vmin.f32 %v2697, 1.0
  %v2730 = vmin.f32 %v2698, 1.0
  %v2731 = vmin.f32 %v2699, 1.0
  %v2732 = vmin.f32 %v2700, 1.0
  %v2733 = vmin.f32 %v2701, 1.0
  %v2734 = vmin.f32 %v2702, 1.0
  %v2735 = vmin.f32 %v2703, 1.0
  %v2736 = vmin.f32 %v2704, 1.0
  %v2737 = vmin.f32 %v2705, 1.0
  %v2738 = vmin.f32 %v2706, 1.0
  %v2739 = vmin.f32 %v2707, 1.0
  %v2740 = vmin.f32 %v2708, 1.0
  %v2741 = vmin.f32 %v2709, 1.0
  %v2742 = vmin.f32 %v2710, 1.0
  %v2743 = vmin.f32 %v2711, 1.0
  %v2744 = vmin.f32 %v2712, 1.0
  %v2745 = vmin.f32 %v2713, 1.0
  %v2746 = vmin.f32 %v2714, 1.0
  %v2747 = vmin.f32 %v2715, 1.0
  %v2748 = vmin.f32 %v2716, 1.0
  %2749 = vmatpush.msra.mxu0 %v2732
  %2750 = vmatpush.msra.mxu0 %v2731
  %2751 = vmatpush.msra.mxu0 %v2730
  %2752 = vmatpush.msra.mxu0 %v2729
  %2753 = vmatpush.msra.mxu0 %v2728
  %2754 = vmatpush.msra.mxu0 %v2727
  %2755 = vmatpush.msra.mxu0 %v2726
  %2756 = vmatpush.msra.mxu0 %v2725
  %2757 = vmatpush.msra.mxu0 %v2724
  %2758 = vmatpush.msra.mxu0 %v2723
  %2759 = vmatpush.msra.mxu0 %v2722
  %2760 = vmatpush.msra.mxu0 %v2721
  %2761 = vmatpush.msra.mxu0 %v2720
  %2762 = vmatpush.msra.mxu0 %v2719
  %2763 = vmatpush.msra.mxu0 %v2718
  %2764 = vmatpush.msra.mxu0 %v2717
  %2765 = vmatmul.f32.gmra.mxu0 %v11
  %v2766 = vpop.f32.mrf.mxu0
  %v2767 = vadd.f32 %v107, %v2766
  %2768 = vmatmul.f32.gmra.mxu0 %v13
  %v2769 = vpop.f32.mrf.mxu0
  %v2770 = vadd.f32 %v108, %v2769
  %2771 = vmatmul.f32.gmra.mxu0 %v15
  %v2772 = vpop.f32.mrf.mxu0
  %v2773 = vadd.f32 %v109, %v2772
  %2774 = vmatmul.f32.gmra.mxu0 %v17
  %v2775 = vpop.f32.mrf.mxu0
  %v2776 = vadd.f32 %v110, %v2775
  %2777 = vmatmul.f32.gmra.mxu0 %v19
  %v2778 = vpop.f32.mrf.mxu0
  %v2779 = vadd.f32 %v111, %v2778
  %2780 = vmatmul.f32.gmra.mxu0 %v21
  %v2781 = vpop.f32.mrf.mxu0
  %v2782 = vadd.f32 %v112, %v2781
  %2783 = vmatmul.f32.gmra.mxu0 %v23
  %v2784 = vpop.f32.mrf.mxu0
  %v2785 = vadd.f32 %v113, %v2784
  %2786 = vmatmul.f32.gmra.mxu0 %v25
  %v2787 = vpop.f32.mrf.mxu0
  %v2788 = vadd.f32 %v114, %v2787
  %2789 = vmatmul.f32.gmra.mxu0 %v27
  %v2790 = vpop.f32.mrf.mxu0
  %v2791 = vadd.f32 %v115, %v2790
  %2792 = vmatmul.f32.gmra.mxu0 %v29
  %v2793 = vpop.f32.mrf.mxu0
  %v2794 = vadd.f32 %v116, %v2793
  %2795 = vmatmul.f32.gmra.mxu0 %v31
  %v2796 = vpop.f32.mrf.mxu0
  %v2797 = vadd.f32 %v117, %v2796
  %2798 = vmatmul.f32.gmra.mxu0 %v33
  %v2799 = vpop.f32.mrf.mxu0
  %v2800 = vadd.f32 %v118, %v2799
  %2801 = vmatmul.f32.gmra.mxu0 %v35
  %v2802 = vpop.f32.mrf.mxu0
  %v2803 = vadd.f32 %v119, %v2802
  %2804 = vmatmul.f32.gmra.mxu0 %v37
  %v2805 = vpop.f32.mrf.mxu0
  %v2806 = vadd.f32 %v120, %v2805
  %2807 = vmatmul.f32.gmra.mxu0 %v39
  %v2808 = vpop.f32.mrf.mxu0
  %v2809 = vadd.f32 %v121, %v2808
  %2810 = vmatmul.f32.gmra.mxu0 %v41
  %v2811 = vpop.f32.mrf.mxu0
  %v2812 = vadd.f32 %v122, %v2811
  %2813 = vmatmul.f32.gmra.mxu0 %v43
  %v2814 = vpop.f32.mrf.mxu0
  %v2815 = vadd.f32 %v123, %v2814
  %2816 = vmatmul.f32.gmra.mxu0 %v45
  %v2817 = vpop.f32.mrf.mxu0
  %v2818 = vadd.f32 %v124, %v2817
  %2819 = vmatmul.f32.gmra.mxu0 %v47
  %v2820 = vpop.f32.mrf.mxu0
  %v2821 = vadd.f32 %v125, %v2820
  %2822 = vmatmul.f32.gmra.mxu0 %v49
  %v2823 = vpop.f32.mrf.mxu0
  %v2824 = vadd.f32 %v126, %v2823
  %2825 = vmatmul.f32.gmra.mxu0 %v51
  %v2826 = vpop.f32.mrf.mxu0
  %v2827 = vadd.f32 %v127, %v2826
  %2828 = vmatmul.f32.gmra.mxu0 %v53
  %v2829 = vpop.f32.mrf.mxu0
  %v2830 = vadd.f32 %v128, %v2829
  %2831 = vmatmul.f32.gmra.mxu0 %v55
  %v2832 = vpop.f32.mrf.mxu0
  %v2833 = vadd.f32 %v129, %v2832
  %2834 = vmatmul.f32.gmra.mxu0 %v57
  %v2835 = vpop.f32.mrf.mxu0
  %v2836 = vadd.f32 %v130, %v2835
  %2837 = vmatmul.f32.gmra.mxu0 %v59
  %v2838 = vpop.f32.mrf.mxu0
  %v2839 = vadd.f32 %v131, %v2838
  %2840 = vmatmul.f32.gmra.mxu0 %v61
  %v2841 = vpop.f32.mrf.mxu0
  %v2842 = vadd.f32 %v132, %v2841
  %2843 = vmatmul.f32.gmra.mxu0 %v63
  %v2844 = vpop.f32.mrf.mxu0
  %v2845 = vadd.f32 %v133, %v2844
  %2846 = vmatmul.f32.gmra.mxu0 %v65
  %v2847 = vpop.f32.mrf.mxu0
  %v2848 = vadd.f32 %v134, %v2847
  %2849 = vmatmul.f32.gmra.mxu0 %v67
  %v2850 = vpop.f32.mrf.mxu0
  %v2851 = vadd.f32 %v135, %v2850
  %2852 = vmatmul.f32.gmra.mxu0 %v69
  %v2853 = vpop.f32.mrf.mxu0
  %v2854 = vadd.f32 %v136, %v2853
  %2855 = vmatmul.f32.gmra.mxu0 %v71
  %v2856 = vpop.f32.mrf.mxu0
  %v2857 = vadd.f32 %v137, %v2856
  %2858 = vmatmul.f32.gmra.mxu0 %v73
  %v2859 = vpop.f32.mrf.mxu0
  %v2860 = vadd.f32 %v138, %v2859
  %2861 = vdwg.mxu0
  %2862 = vmatpush.msra.mxu0 %v2748
  %2863 = vmatpush.msra.mxu0 %v2747
  %2864 = vmatpush.msra.mxu0 %v2746
  %2865 = vmatpush.msra.mxu0 %v2745
  %2866 = vmatpush.msra.mxu0 %v2744
  %2867 = vmatpush.msra.mxu0 %v2743
  %2868 = vmatpush.msra.mxu0 %v2742
  %2869 = vmatpush.msra.mxu0 %v2741
  %2870 = vmatpush.msra.mxu0 %v2740
  %2871 = vmatpush.msra.mxu0 %v2739
  %2872 = vmatpush.msra.mxu0 %v2738
  %2873 = vmatpush.msra.mxu0 %v2737
  %2874 = vmatpush.msra.mxu0 %v2736
  %2875 = vmatpush.msra.mxu0 %v2735
  %2876 = vmatpush.msra.mxu0 %v2734
  %2877 = vmatpush.msra.mxu0 %v2733
  %2878 = vmatmul.f32.gmra.mxu0 %v12
  %v2879 = vpop.f32.mrf.mxu0
  %v2880 = vadd.f32 %v2767, %v2879
  %2881 = vmatmul.f32.gmra.mxu0 %v14
  %v2882 = vpop.f32.mrf.mxu0
  %v2883 = vadd.f32 %v2770, %v2882
  %2884 = vmatmul.f32.gmra.mxu0 %v16
  %v2885 = vpop.f32.mrf.mxu0
  %v2886 = vadd.f32 %v2773, %v2885
  %2887 = vmatmul.f32.gmra.mxu0 %v18
  %v2888 = vpop.f32.mrf.mxu0
  %v2889 = vadd.f32 %v2776, %v2888
  %2890 = vmatmul.f32.gmra.mxu0 %v20
  %v2891 = vpop.f32.mrf.mxu0
  %v2892 = vadd.f32 %v2779, %v2891
  %2893 = vmatmul.f32.gmra.mxu0 %v22
  %v2894 = vpop.f32.mrf.mxu0
  %v2895 = vadd.f32 %v2782, %v2894
  %2896 = vmatmul.f32.gmra.mxu0 %v24
  %v2897 = vpop.f32.mrf.mxu0
  %v2898 = vadd.f32 %v2785, %v2897
  %2899 = vmatmul.f32.gmra.mxu0 %v26
  %v2900 = vpop.f32.mrf.mxu0
  %v2901 = vadd.f32 %v2788, %v2900
  %2902 = vmatmul.f32.gmra.mxu0 %v28
  %v2903 = vpop.f32.mrf.mxu0
  %v2904 = vadd.f32 %v2791, %v2903
  %2905 = vmatmul.f32.gmra.mxu0 %v30
  %v2906 = vpop.f32.mrf.mxu0
  %v2907 = vadd.f32 %v2794, %v2906
  %2908 = vmatmul.f32.gmra.mxu0 %v32
  %v2909 = vpop.f32.mrf.mxu0
  %v2910 = vadd.f32 %v2797, %v2909
  %2911 = vmatmul.f32.gmra.mxu0 %v34
  %v2912 = vpop.f32.mrf.mxu0
  %v2913 = vadd.f32 %v2800, %v2912
  %2914 = vmatmul.f32.gmra.mxu0 %v36
  %v2915 = vpop.f32.mrf.mxu0
  %v2916 = vadd.f32 %v2803, %v2915
  %2917 = vmatmul.f32.gmra.mxu0 %v38
  %v2918 = vpop.f32.mrf.mxu0
  %v2919 = vadd.f32 %v2806, %v2918
  %2920 = vmatmul.f32.gmra.mxu0 %v40
  %v2921 = vpop.f32.mrf.mxu0
  %v2922 = vadd.f32 %v2809, %v2921
  %2923 = vmatmul.f32.gmra.mxu0 %v42
  %v2924 = vpop.f32.mrf.mxu0
  %v2925 = vadd.f32 %v2812, %v2924
  %2926 = vmatmul.f32.gmra.mxu0 %v44
  %v2927 = vpop.f32.mrf.mxu0
  %v2928 = vadd.f32 %v2815, %v2927
  %2929 = vmatmul.f32.gmra.mxu0 %v46
  %v2930 = vpop.f32.mrf.mxu0
  %v2931 = vadd.f32 %v2818, %v2930
  %2932 = vmatmul.f32.gmra.mxu0 %v48
  %v2933 = vpop.f32.mrf.mxu0
  %v2934 = vadd.f32 %v2821, %v2933
  %2935 = vmatmul.f32.gmra.mxu0 %v50
  %v2936 = vpop.f32.mrf.mxu0
  %v2937 = vadd.f32 %v2824, %v2936
  %2938 = vmatmul.f32.gmra.mxu0 %v52
  %v2939 = vpop.f32.mrf.mxu0
  %v2940 = vadd.f32 %v2827, %v2939
  %2941 = vmatmul.f32.gmra.mxu0 %v54
  %v2942 = vpop.f32.mrf.mxu0
  %v2943 = vadd.f32 %v2830, %v2942
  %2944 = vmatmul.f32.gmra.mxu0 %v56
  %v2945 = vpop.f32.mrf.mxu0
  %v2946 = vadd.f32 %v2833, %v2945
  %2947 = vmatmul.f32.gmra.mxu0 %v58
  %v2948 = vpop.f32.mrf.mxu0
  %v2949 = vadd.f32 %v2836, %v2948
  %2950 = vmatmul.f32.gmra.mxu0 %v60
  %v2951 = vpop.f32.mrf.mxu0
  %v2952 = vadd.f32 %v2839, %v2951
  %2953 = vmatmul.f32.gmra.mxu0 %v62
  %v2954 = vpop.f32.mrf.mxu0
  %v2955 = vadd.f32 %v2842, %v2954
  %2956 = vmatmul.f32.gmra.mxu0 %v64
  %v2957 = vpop.f32.mrf.mxu0
  %v2958 = vadd.f32 %v2845, %v2957
  %2959 = vmatmul.f32.gmra.mxu0 %v66
  %v2960 = vpop.f32.mrf.mxu0
  %v2961 = vadd.f32 %v2848, %v2960
  %2962 = vmatmul.f32.gmra.mxu0 %v68
  %v2963 = vpop.f32.mrf.mxu0
  %v2964 = vadd.f32 %v2851, %v2963
  %2965 = vmatmul.f32.gmra.mxu0 %v70
  %v2966 = vpop.f32.mrf.mxu0
  %v2967 = vadd.f32 %v2854, %v2966
  %2968 = vmatmul.f32.gmra.mxu0 %v72
  %v2969 = vpop.f32.mrf.mxu0
  %v2970 = vadd.f32 %v2857, %v2969
  %2971 = vmatmul.f32.gmra.mxu0 %v74
  %v2972 = vpop.f32.mrf.mxu0
  %v2973 = vadd.f32 %v2860, %v2972
  %2974 = vdwg.mxu0
  %v2975 = vmax.f32 %v2880, 0.0
  %v2976 = vmax.f32 %v2883, 0.0
  %v2977 = vmax.f32 %v2886, 0.0
  %v2978 = vmax.f32 %v2889, 0.0
  %v2979 = vmax.f32 %v2892, 0.0
  %v2980 = vmax.f32 %v2895, 0.0
  %v2981 = vmax.f32 %v2898, 0.0
  %v2982 = vmax.f32 %v2901, 0.0
  %v2983 = vmax.f32 %v2904, 0.0
  %v2984 = vmax.f32 %v2907, 0.0
  %v2985 = vmax.f32 %v2910, 0.0
  %v2986 = vmax.f32 %v2913, 0.0
  %v2987 = vmax.f32 %v2916, 0.0
  %v2988 = vmax.f32 %v2919, 0.0
  %v2989 = vmax.f32 %v2922, 0.0
  %v2990 = vmax.f32 %v2925, 0.0
  %v2991 = vmax.f32 %v2928, 0.0
  %v2992 = vmax.f32 %v2931, 0.0
  %v2993 = vmax.f32 %v2934, 0.0
  %v2994 = vmax.f32 %v2937, 0.0
  %v2995 = vmax.f32 %v2940, 0.0
  %v2996 = vmax.f32 %v2943, 0.0
  %v2997 = vmax.f32 %v2946, 0.0
  %v2998 = vmax.f32 %v2949, 0.0
  %v2999 = vmax.f32 %v2952, 0.0
  %v3000 = vmax.f32 %v2955, 0.0
  %v3001 = vmax.f32 %v2958, 0.0
  %v3002 = vmax.f32 %v2961, 0.0
  %v3003 = vmax.f32 %v2964, 0.0
  %v3004 = vmax.f32 %v2967, 0.0
  %v3005 = vmax.f32 %v2970, 0.0
  %v3006 = vmax.f32 %v2973, 0.0
  %v3007 = vmin.f32 %v2975, 1.0
  %v3008 = vmin.f32 %v2976, 1.0
  %v3009 = vmin.f32 %v2977, 1.0
  %v3010 = vmin.f32 %v2978, 1.0
  %v3011 = vmin.f32 %v2979, 1.0
  %v3012 = vmin.f32 %v2980, 1.0
  %v3013 = vmin.f32 %v2981, 1.0
  %v3014 = vmin.f32 %v2982, 1.0
  %v3015 = vmin.f32 %v2983, 1.0
  %v3016 = vmin.f32 %v2984, 1.0
  %v3017 = vmin.f32 %v2985, 1.0
  %v3018 = vmin.f32 %v2986, 1.0
  %v3019 = vmin.f32 %v2987, 1.0
  %v3020 = vmin.f32 %v2988, 1.0
  %v3021 = vmin.f32 %v2989, 1.0
  %v3022 = vmin.f32 %v2990, 1.0
  %v3023 = vmin.f32 %v2991, 1.0
  %v3024 = vmin.f32 %v2992, 1.0
  %v3025 = vmin.f32 %v2993, 1.0
  %v3026 = vmin.f32 %v2994, 1.0
  %v3027 = vmin.f32 %v2995, 1.0
  %v3028 = vmin.f32 %v2996, 1.0
  %v3029 = vmin.f32 %v2997, 1.0
  %v3030 = vmin.f32 %v2998, 1.0
  %v3031 = vmin.f32 %v2999, 1.0
  %v3032 = vmin.f32 %v3000, 1.0
  %v3033 = vmin.f32 %v3001, 1.0
  %v3034 = vmin.f32 %v3002, 1.0
  %v3035 = vmin.f32 %v3003, 1.0
  %v3036 = vmin.f32 %v3004, 1.0
  %v3037 = vmin.f32 %v3005, 1.0
  %v3038 = vmin.f32 %v3006, 1.0
  %vm3039 = vcmask 64512
  %3040 = vst.msk [vmem:[%s2] sm:$0xff] %vm3039, %v3007
  %3041 = vst.msk [vmem:[%s2 + $0x8] sm:$0xff] %vm3039, %v3008
  %3042 = vst.msk [vmem:[%s2 + $0x10] sm:$0xff] %vm3039, %v3009
  %3043 = vst.msk [vmem:[%s2 + $0x18] sm:$0xff] %vm3039, %v3010
  %3044 = vst.msk [vmem:[%s2 + $0x20] sm:$0xff] %vm3039, %v3011
  %3045 = vst.msk [vmem:[%s2 + $0x28] sm:$0xff] %vm3039, %v3012
  %3046 = vst.msk [vmem:[%s2 + $0x30] sm:$0xff] %vm3039, %v3013
  %3047 = vst.msk [vmem:[%s2 + $0x38] sm:$0xff] %vm3039, %v3014
  %3048 = vst.msk [vmem:[%s2 + $0x40] sm:$0xff] %vm3039, %v3015
  %3049 = vst.msk [vmem:[%s2 + $0x48] sm:$0xff] %vm3039, %v3016
  %3050 = vst.msk [vmem:[%s2 + $0x50] sm:$0xff] %vm3039, %v3017
  %3051 = vst.msk [vmem:[%s2 + $0x58] sm:$0xff] %vm3039, %v3018
  %3052 = vst.msk [vmem:[%s2 + $0x60] sm:$0xff] %vm3039, %v3019
  %3053 = vst.msk [vmem:[%s2 + $0x68] sm:$0xff] %vm3039, %v3020
  %3054 = vst.msk [vmem:[%s2 + $0x70] sm:$0xff] %vm3039, %v3021
  %3055 = vst.msk [vmem:[%s2 + $0x78] sm:$0xff] %vm3039, %v3022
  %3056 = vst.msk [vmem:[%s2 + $0x80] sm:$0xff] %vm3039, %v3023
  %3057 = vst.msk [vmem:[%s2 + $0x88] sm:$0xff] %vm3039, %v3024
  %3058 = vst.msk [vmem:[%s2 + $0x90] sm:$0xff] %vm3039, %v3025
  %3059 = vst.msk [vmem:[%s2 + $0x98] sm:$0xff] %vm3039, %v3026
  %3060 = vst.msk [vmem:[%s2 + $0xa0] sm:$0xff] %vm3039, %v3027
  %3061 = vst.msk [vmem:[%s2 + $0xa8] sm:$0xff] %vm3039, %v3028
  %3062 = vst.msk [vmem:[%s2 + $0xb0] sm:$0xff] %vm3039, %v3029
  %3063 = vst.msk [vmem:[%s2 + $0xb8] sm:$0xff] %vm3039, %v3030
  %3064 = vst.msk [vmem:[%s2 + $0xc0] sm:$0xff] %vm3039, %v3031
  %3065 = vst.msk [vmem:[%s2 + $0xc8] sm:$0xff] %vm3039, %v3032
  %3066 = vst.msk [vmem:[%s2 + $0xd0] sm:$0xff] %vm3039, %v3033
  %3067 = vst.msk [vmem:[%s2 + $0xd8] sm:$0xff] %vm3039, %v3034
  %3068 = vst.msk [vmem:[%s2 + $0xe0] sm:$0xff] %vm3039, %v3035
  %3069 = vst.msk [vmem:[%s2 + $0xe8] sm:$0xff] %vm3039, %v3036
  %3070 = vst.msk [vmem:[%s2 + $0xf0] sm:$0xff] %vm3039, %v3037
  %3071 = vst.msk [vmem:[%s2 + $0xf8] sm:$0xff] %vm3039, %v3038
  // Predicated region
  $region10: #{prop_model_forward.1} parent=0 // pred_check
    _
  $region11: #{prop_model_forward.1} parent=0 // pred_check_branch
    %3073 = sbr.rel (0) target = $region13
  $region12: #{prop_model_forward.1} parent=0 // pred_region
    _
  $region13: #{prop_model_forward.1} parent=0 // pred_fallthru
    _
  // Predicated region
  $region14: #{prop_model_forward.1} parent=0 // pred_check
    _
  $region15: #{prop_model_forward.1} parent=0 // pred_check_branch
    %3075 = sbr.rel (0) target = $region17
  $region16: #{prop_model_forward.1} parent=0 // pred_region
    _
  $region17: #{prop_model_forward.1} parent=0 // pred_fallthru
    _

</llo_original>
